<compile_context>
chip_gen: v7x
topology: tpu7x:2x2x1
jax: 0.10.0
libtpu: 0.0.40
codegen_flags: <defaults>
</compile_context>

<pallas_src>
import jax
import jax.numpy as jnp
import numpy as np
from jax import lax
from jax.experimental import pallas as pl
from jax.experimental.pallas import tpu as pltpu

C = 63          # channel count fixed by nn.Linear(63, 63)
LN_EPS = 1e-5   # torch.nn.LayerNorm default eps


def _cdiv(a, b):
    return -(-a // b)


def _proj_kernel(x_ref, w_ref, b_ref, g_ref, h_ref, o_ref):
    """x_ref/o_ref: (G, C, Ts); w: (C+1, C); b: (C+1, 1); gamma/beta: (C, 1).

    Row C of w holds the column means of W and row C of b holds mean(bias),
    so one matmul produces both y = W@x + b (rows 0..C-1) and the LayerNorm
    channel mean mu (row C).
    """
    w = w_ref[...]
    b = b_ref[...]
    gamma = g_ref[...]
    beta = h_ref[...]
    n_slabs = x_ref.shape[0]
    inv_c = jnp.float32(1.0 / C)

    def one_slab(g):
        x_cs = x_ref[g].astype(jnp.float32)                             # (C, Ts)
        z = jnp.dot(w, x_cs, preferred_element_type=jnp.float32) + b    # (C+1, Ts)
        mu = z[C:C + 1, :]                                               # (1, Ts)
        # sum_{c<C} y^2 = sum over all C+1 rows of z^2 minus mu^2
        s2 = jnp.sum(z * z, axis=0, keepdims=True) - mu * mu
        var = s2 * inv_c - mu * mu                                       # E[y^2]-mu^2
        yn = (z[:C, :] - mu) * lax.rsqrt(var + LN_EPS)                   # (C, Ts)
        o_ref[g] = (yn * gamma + beta).astype(o_ref.dtype)

    if n_slabs == 1:
        one_slab(0)
    elif n_slabs <= 4:
        @pl.loop(0, n_slabs, unroll=True)
        def _(g):
            one_slab(g)
    else:
        def body(g, carry):
            one_slab(g)
            return carry
        lax.fori_loop(0, n_slabs, body, 0, unroll=2)


def _vmem_budget():
    """(vmem_limit_bytes, per-array block byte budget), generation aware."""
    try:
        cap = int(pltpu.get_tpu_info().vmem_capacity_bytes)
    except Exception:
        cap = 64 * 1024 * 1024            # v7x has the smallest VMEM; safe floor
    vmem_limit = min(cap * 3 // 4, 96 * 1024 * 1024)
    # 2 block arrays x 2 pipeline buffers, plus params / compiler scratch headroom.
    budget = max(1 * 1024 * 1024, vmem_limit // 6)
    return vmem_limit, budget


def _select_tiling(BO, S, itemsize, budget_bytes):
    """Pick slab group G and S tile Ts for blocks of shape (G, 63, Ts)."""
    lane, sub = 128, 64                    # 63 channels pad to 64 sublanes

    def slab_bytes(ts):
        return sub * (_cdiv(ts, lane) * lane) * itemsize

    if slab_bytes(S) <= budget_bytes:
        Ts = S                             # full-extent S block (always legal)
    else:
        Ts = max(lane, (budget_bytes // (sub * itemsize)) // lane * lane)
        Ts = min(Ts, S // lane * lane)     # lane-dense multiple of 128
    n_s = _cdiv(S, Ts)

    g_budget = min(BO, max(1, budget_bytes // slab_bytes(Ts)))
    # Keep >= 4 total grid steps so the pipeline overlaps DMA with compute and
    # v7x's two TensorCores both get work on the "parallel" axes.
    target_steps = 4
    need = _cdiv(target_steps, n_s)
    g_steps = BO if need <= 1 else max(1, (BO - 1) // (need - 1))
    return min(g_budget, g_steps), Ts, n_s


def channel_attention_forward(x, params, *, sequence_num=250, inter=30):
    """Pallas forward of channel_attention.

    params = (wq, bq, gq, hq, wk, bk, gk, hk, wp, bp, gp, hp), torch
    conventions (Linear weight is (out_features, in_features)).  Only the
    projection-branch parameters influence the output (see module note); the
    q/k parameters and sequence_num/inter feed the mathematically inert
    softmax branch and are accepted only for interface compatibility.
    """
    B, O, C_, S = x.shape
    assert C_ == C
    del sequence_num, inter  # only used by the inert attention branch

    (_wq, _bq, _gq, _hq, _wk, _bk, _gk, _hk, wp, bp, gp, hp) = params
    wp = wp.astype(jnp.float32)                               # (C, C)
    bp = jnp.reshape(bp, (C,)).astype(jnp.float32)
    # Augment: row C of W = column means of W, row C of b = mean(b), so the
    # MXU also produces the LayerNorm channel mean (the 64th row is free).
    w_aug = jnp.concatenate([wp, jnp.mean(wp, axis=0, keepdims=True)], axis=0)
    b_aug = jnp.concatenate([bp, jnp.mean(bp, keepdims=True)]).reshape(C + 1, 1)
    gp = jnp.reshape(gp, (C, 1)).astype(jnp.float32)
    hp = jnp.reshape(hp, (C, 1)).astype(jnp.float32)

    BO = B * O
    x3 = x.reshape(BO, C, S)                                  # free reshape

    vmem_limit, budget = _vmem_budget()
    G, Ts, n_s = _select_tiling(BO, S, x.dtype.itemsize, budget)
    n_bo = _cdiv(BO, G)

    x_spec = pl.BlockSpec((G, C, Ts), lambda i, j: (i, 0, j))
    out3 = pl.pallas_call(
        _proj_kernel,
        out_shape=jax.ShapeDtypeStruct((BO, C, S), x.dtype),
        grid=(n_bo, n_s),
        in_specs=[x_spec,
                  pl.BlockSpec((C + 1, C), lambda i, j: (0, 0)),
                  pl.BlockSpec((C + 1, 1), lambda i, j: (0, 0)),
                  pl.BlockSpec((C, 1), lambda i, j: (0, 0)),
                  pl.BlockSpec((C, 1), lambda i, j: (0, 0))],
        out_specs=x_spec,
        compiler_params=pltpu.CompilerParams(
            dimension_semantics=("parallel", "parallel"),
            vmem_limit_bytes=vmem_limit),
    )(x3, w_aug, b_aug, gp, hp)
    return out3.reshape(B, O, C, S)


def reference(x, params, *, sequence_num, inter):
    """Pure-JAX mirror of the full PyTorch forward (eval mode), including the
    inert attention branch, used to validate the reduced Pallas kernel."""
    wq, bq, gq, hq, wk, bk, gk, hk, wp, bp, gp, hp = params

    def lin_ln(t, w, b, g, h):
        y = t @ w.T + b.reshape(-1)
        mu = y.mean(-1, keepdims=True)
        var = ((y - mu) ** 2).mean(-1, keepdims=True)
        return (y - mu) / jnp.sqrt(var + LN_EPS) * g.reshape(-1) + h.reshape(-1)

    temp = jnp.swapaxes(x, -1, -2)                                   # b o s c
    q = jnp.swapaxes(lin_ln(temp, wq, bq, gq, hq), -1, -2)           # b o c s
    k = jnp.swapaxes(lin_ln(temp, wk, bk, gk, hk), -1, -2)
    scaling = int(sequence_num / inter) ** 0.5
    atten = jnp.einsum('bocs,boms->bocm', q, k) / scaling
    score = jax.nn.softmax(atten, axis=-1)
    out = jnp.einsum('bocs,bocm->bocs', x, score)
    out = jnp.swapaxes(out, -1, -2)
    out = lin_ln(out, wp, bp, gp, hp)
    return jnp.swapaxes(out, -1, -2)


if __name__ == "__main__":
    # BO = 10 -> G = 3, grid = (4, 1): exercises the unrolled multi-slab loop
    # and a ragged (masked) last block.  S multiple of 128 -> lane-dense.
    B, O, S = 2, 5, 256
    sequence_num, inter = 250, 30       # module defaults (inert branch only)

    keys = jax.random.split(jax.random.PRNGKey(0), 8)
    x = jax.random.normal(keys[0], (B, O, C, S), dtype=jnp.float32)

    def xavier(k):
        std = (2.0 / (C + C)) ** 0.5
        return jax.random.normal(k, (C, C), dtype=jnp.float32) * std

    zero = jnp.zeros((C,), jnp.float32)
    one = jnp.ones((C,), jnp.float32)
    # q/k branches use the module's default init (they cannot affect the
    # output); the projection branch gets non-trivial affine params so the
    # bias / gamma / beta code paths are actually exercised.
    bp = 0.1 * jax.random.normal(keys[4], (C,), dtype=jnp.float32)
    gp = 1.0 + 0.1 * jax.random.normal(keys[5], (C,), dtype=jnp.float32)
    hp = 0.1 * jax.random.normal(keys[6], (C,), dtype=jnp.float32)
    params = (xavier(keys[1]), zero, one, zero,     # query
              xavier(keys[2]), zero, one, zero,     # key
              xavier(keys[3]), bp, gp, hp)          # projection

    y = channel_attention_forward(x, params,
                                  sequence_num=sequence_num, inter=inter)
    y = jax.block_until_ready(y)

    y_ref = reference(x, params, sequence_num=sequence_num, inter=inter)
    if not np.allclose(np.asarray(y), np.asarray(y_ref), atol=5e-3, rtol=5e-3):
        err = float(jnp.max(jnp.abs(y - y_ref)))
        raise AssertionError(
            f"Pallas kernel does not match reference (max abs err {err:.3e})")

    print("KERNEL_OK")
</pallas_src>

<mosaic_0001>
module attributes {stable_mosaic.version = 11 : i64} {
  func.func @_proj_kernel(%arg0: i32, %arg1: i32, %arg2: memref<3x63x256xf32, #tpu.memory_space<vmem>>, %arg3: memref<64x63xf32, #tpu.memory_space<vmem>>, %arg4: memref<64x1xf32, #tpu.memory_space<vmem>>, %arg5: memref<63x1xf32, #tpu.memory_space<vmem>>, %arg6: memref<63x1xf32, #tpu.memory_space<vmem>>, %arg7: memref<3x63x256xf32, #tpu.memory_space<vmem>>) attributes {dimension_semantics = [#tpu.dimension_semantics<parallel>, #tpu.dimension_semantics<parallel>], iteration_bounds = array<i64: 4, 1>, scalar_prefetch = 0 : i64, scratch_operands = 0 : i64, tpu.core_type = #tpu.core_type<tc>, window_params = [{transform_indices = @transform_0, window_bounds = array<i64: 3, 63, 256>}, {pipeline_mode = #tpu.pipeline_mode<synchronous>, transform_indices = @transform_1, window_bounds = array<i64: 64, 63>}, {pipeline_mode = #tpu.pipeline_mode<synchronous>, transform_indices = @transform_2, window_bounds = array<i64: 64, 1>}, {pipeline_mode = #tpu.pipeline_mode<synchronous>, transform_indices = @transform_3, window_bounds = array<i64: 63, 1>}, {pipeline_mode = #tpu.pipeline_mode<synchronous>, transform_indices = @transform_4, window_bounds = array<i64: 63, 1>}, {transform_indices = @transform_5, window_bounds = array<i64: 3, 63, 256>}]} {
    %c0 = arith.constant 0 : index
    %c0_0 = arith.constant 0 : index
    %0 = vector.load %arg3[%c0, %c0_0] : memref<64x63xf32, #tpu.memory_space<vmem>>, vector<64x63xf32>
    %c0_1 = arith.constant 0 : index
    %c0_2 = arith.constant 0 : index
    %1 = vector.load %arg4[%c0_1, %c0_2] : memref<64x1xf32, #tpu.memory_space<vmem>>, vector<64x1xf32>
    %c0_3 = arith.constant 0 : index
    %c0_4 = arith.constant 0 : index
    %2 = vector.load %arg5[%c0_3, %c0_4] : memref<63x1xf32, #tpu.memory_space<vmem>>, vector<63x1xf32>
    %c0_5 = arith.constant 0 : index
    %c0_6 = arith.constant 0 : index
    %3 = vector.load %arg6[%c0_5, %c0_6] : memref<63x1xf32, #tpu.memory_space<vmem>>, vector<63x1xf32>
    %cst = arith.constant 0.0158730168 : f32
    %c0_i32 = arith.constant 0 : i32
    %c1_i32 = arith.constant 1 : i32
    %4 = arith.muli %c0_i32, %c1_i32 : i32
    %c0_i32_7 = arith.constant 0 : i32
    %5 = arith.addi %c0_i32_7, %4 : i32
    %6 = arith.index_cast %5 : i32 to index
    %c0_8 = arith.constant 0 : index
    %c0_9 = arith.constant 0 : index
    %7 = vector.load %arg2[%6, %c0_8, %c0_9] : memref<3x63x256xf32, #tpu.memory_space<vmem>>, vector<1x63x256xf32>
    %8 = vector.shape_cast %7 : vector<1x63x256xf32> to vector<63x256xf32>
    %cst_10 = arith.constant dense<0.000000e+00> : vector<64x256xf32>
    %9 = tpu.matmul %0, %8, %cst_10 {dimension_numbers = #tpu.dot_dimension_numbers<[1], [0], [0], [1], [0, 0, 1, 1], [], []>} : vector<64x63xf32>, vector<63x256xf32>, vector<64x256xf32> -> vector<64x256xf32>
    %10 = vector.broadcast %1 : vector<64x1xf32> to vector<64x256xf32>
    %11 = arith.addf %9, %10 : vector<64x256xf32>
    %12 = vector.extract_strided_slice %11 {offsets = [63, 0], sizes = [1, 256], strides = [1, 1]} : vector<64x256xf32> to vector<1x256xf32>
    %13 = arith.mulf %11, %11 : vector<64x256xf32>
    %cst_11 = arith.constant dense<0.000000e+00> : vector<256xf32>
    %14 = vector.multi_reduction <add>, %13, %cst_11 [0] : vector<64x256xf32> to vector<256xf32>
    %15 = vector.shape_cast %14 : vector<256xf32> to vector<1x256xf32>
    %16 = arith.mulf %12, %12 : vector<1x256xf32>
    %17 = arith.subf %15, %16 : vector<1x256xf32>
    %18 = vector.broadcast %cst : f32 to vector<1x256xf32>
    %19 = arith.mulf %17, %18 : vector<1x256xf32>
    %20 = arith.mulf %12, %12 : vector<1x256xf32>
    %21 = arith.subf %19, %20 : vector<1x256xf32>
    %22 = vector.extract_strided_slice %11 {offsets = [0, 0], sizes = [63, 256], strides = [1, 1]} : vector<64x256xf32> to vector<63x256xf32>
    %23 = vector.broadcast %12 : vector<1x256xf32> to vector<63x256xf32>
    %24 = arith.subf %22, %23 : vector<63x256xf32>
    %cst_12 = arith.constant 9.99999974E-6 : f32
    %25 = vector.broadcast %cst_12 : f32 to vector<1x256xf32>
    %26 = arith.addf %21, %25 : vector<1x256xf32>
    %27 = math.rsqrt %26 : vector<1x256xf32>
    %28 = vector.broadcast %27 : vector<1x256xf32> to vector<63x256xf32>
    %29 = arith.mulf %24, %28 : vector<63x256xf32>
    %30 = vector.broadcast %2 : vector<63x1xf32> to vector<63x256xf32>
    %31 = arith.mulf %29, %30 : vector<63x256xf32>
    %32 = vector.broadcast %3 : vector<63x1xf32> to vector<63x256xf32>
    %33 = arith.addf %31, %32 : vector<63x256xf32>
    %34 = arith.index_cast %5 : i32 to index
    %c0_13 = arith.constant 0 : index
    %c0_14 = arith.constant 0 : index
    %35 = vector.load %arg7[%34, %c0_13, %c0_14] : memref<3x63x256xf32, #tpu.memory_space<vmem>>, vector<1x63x256xf32>
    %36 = vector.shape_cast %35 : vector<1x63x256xf32> to vector<63x256xf32>
    %37 = vector.shape_cast %33 : vector<63x256xf32> to vector<1x63x256xf32>
    tpu.vector_store %arg7[%34, %c0_13, %c0_14], %37 {strides = array<i32>} : memref<3x63x256xf32, #tpu.memory_space<vmem>>, vector<1x63x256xf32>,
    %c1_i32_15 = arith.constant 1 : i32
    %c1_i32_16 = arith.constant 1 : i32
    %38 = arith.muli %c1_i32_15, %c1_i32_16 : i32
    %c0_i32_17 = arith.constant 0 : i32
    %39 = arith.addi %c0_i32_17, %38 : i32
    %40 = arith.index_cast %39 : i32 to index
    %c0_18 = arith.constant 0 : index
    %c0_19 = arith.constant 0 : index
    %41 = vector.load %arg2[%40, %c0_18, %c0_19] : memref<3x63x256xf32, #tpu.memory_space<vmem>>, vector<1x63x256xf32>
    %42 = vector.shape_cast %41 : vector<1x63x256xf32> to vector<63x256xf32>
    %cst_20 = arith.constant dense<0.000000e+00> : vector<64x256xf32>
    %43 = tpu.matmul %0, %42, %cst_20 {dimension_numbers = #tpu.dot_dimension_numbers<[1], [0], [0], [1], [0, 0, 1, 1], [], []>} : vector<64x63xf32>, vector<63x256xf32>, vector<64x256xf32> -> vector<64x256xf32>
    %44 = vector.broadcast %1 : vector<64x1xf32> to vector<64x256xf32>
    %45 = arith.addf %43, %44 : vector<64x256xf32>
    %46 = vector.extract_strided_slice %45 {offsets = [63, 0], sizes = [1, 256], strides = [1, 1]} : vector<64x256xf32> to vector<1x256xf32>
    %47 = arith.mulf %45, %45 : vector<64x256xf32>
    %cst_21 = arith.constant dense<0.000000e+00> : vector<256xf32>
    %48 = vector.multi_reduction <add>, %47, %cst_21 [0] : vector<64x256xf32> to vector<256xf32>
    %49 = vector.shape_cast %48 : vector<256xf32> to vector<1x256xf32>
    %50 = arith.mulf %46, %46 : vector<1x256xf32>
    %51 = arith.subf %49, %50 : vector<1x256xf32>
    %52 = vector.broadcast %cst : f32 to vector<1x256xf32>
    %53 = arith.mulf %51, %52 : vector<1x256xf32>
    %54 = arith.mulf %46, %46 : vector<1x256xf32>
    %55 = arith.subf %53, %54 : vector<1x256xf32>
    %56 = vector.extract_strided_slice %45 {offsets = [0, 0], sizes = [63, 256], strides = [1, 1]} : vector<64x256xf32> to vector<63x256xf32>
    %57 = vector.broadcast %46 : vector<1x256xf32> to vector<63x256xf32>
    %58 = arith.subf %56, %57 : vector<63x256xf32>
    %cst_22 = arith.constant 9.99999974E-6 : f32
    %59 = vector.broadcast %cst_22 : f32 to vector<1x256xf32>
    %60 = arith.addf %55, %59 : vector<1x256xf32>
    %61 = math.rsqrt %60 : vector<1x256xf32>
    %62 = vector.broadcast %61 : vector<1x256xf32> to vector<63x256xf32>
    %63 = arith.mulf %58, %62 : vector<63x256xf32>
    %64 = vector.broadcast %2 : vector<63x1xf32> to vector<63x256xf32>
    %65 = arith.mulf %63, %64 : vector<63x256xf32>
    %66 = vector.broadcast %3 : vector<63x1xf32> to vector<63x256xf32>
    %67 = arith.addf %65, %66 : vector<63x256xf32>
    %68 = arith.index_cast %39 : i32 to index
    %c0_23 = arith.constant 0 : index
    %c0_24 = arith.constant 0 : index
    %69 = vector.load %arg7[%68, %c0_23, %c0_24] : memref<3x63x256xf32, #tpu.memory_space<vmem>>, vector<1x63x256xf32>
    %70 = vector.shape_cast %69 : vector<1x63x256xf32> to vector<63x256xf32>
    %71 = vector.shape_cast %67 : vector<63x256xf32> to vector<1x63x256xf32>
    tpu.vector_store %arg7[%68, %c0_23, %c0_24], %71 {strides = array<i32>} : memref<3x63x256xf32, #tpu.memory_space<vmem>>, vector<1x63x256xf32>,
    %c2_i32 = arith.constant 2 : i32
    %c1_i32_25 = arith.constant 1 : i32
    %72 = arith.muli %c2_i32, %c1_i32_25 : i32
    %c0_i32_26 = arith.constant 0 : i32
    %73 = arith.addi %c0_i32_26, %72 : i32
    %74 = arith.index_cast %73 : i32 to index
    %c0_27 = arith.constant 0 : index
    %c0_28 = arith.constant 0 : index
    %75 = vector.load %arg2[%74, %c0_27, %c0_28] : memref<3x63x256xf32, #tpu.memory_space<vmem>>, vector<1x63x256xf32>
    %76 = vector.shape_cast %75 : vector<1x63x256xf32> to vector<63x256xf32>
    %cst_29 = arith.constant dense<0.000000e+00> : vector<64x256xf32>
    %77 = tpu.matmul %0, %76, %cst_29 {dimension_numbers = #tpu.dot_dimension_numbers<[1], [0], [0], [1], [0, 0, 1, 1], [], []>} : vector<64x63xf32>, vector<63x256xf32>, vector<64x256xf32> -> vector<64x256xf32>
    %78 = vector.broadcast %1 : vector<64x1xf32> to vector<64x256xf32>
    %79 = arith.addf %77, %78 : vector<64x256xf32>
    %80 = vector.extract_strided_slice %79 {offsets = [63, 0], sizes = [1, 256], strides = [1, 1]} : vector<64x256xf32> to vector<1x256xf32>
    %81 = arith.mulf %79, %79 : vector<64x256xf32>
    %cst_30 = arith.constant dense<0.000000e+00> : vector<256xf32>
    %82 = vector.multi_reduction <add>, %81, %cst_30 [0] : vector<64x256xf32> to vector<256xf32>
    %83 = vector.shape_cast %82 : vector<256xf32> to vector<1x256xf32>
    %84 = arith.mulf %80, %80 : vector<1x256xf32>
    %85 = arith.subf %83, %84 : vector<1x256xf32>
    %86 = vector.broadcast %cst : f32 to vector<1x256xf32>
    %87 = arith.mulf %85, %86 : vector<1x256xf32>
    %88 = arith.mulf %80, %80 : vector<1x256xf32>
    %89 = arith.subf %87, %88 : vector<1x256xf32>
    %90 = vector.extract_strided_slice %79 {offsets = [0, 0], sizes = [63, 256], strides = [1, 1]} : vector<64x256xf32> to vector<63x256xf32>
    %91 = vector.broadcast %80 : vector<1x256xf32> to vector<63x256xf32>
    %92 = arith.subf %90, %91 : vector<63x256xf32>
    %cst_31 = arith.constant 9.99999974E-6 : f32
    %93 = vector.broadcast %cst_31 : f32 to vector<1x256xf32>
    %94 = arith.addf %89, %93 : vector<1x256xf32>
    %95 = math.rsqrt %94 : vector<1x256xf32>
    %96 = vector.broadcast %95 : vector<1x256xf32> to vector<63x256xf32>
    %97 = arith.mulf %92, %96 : vector<63x256xf32>
    %98 = vector.broadcast %2 : vector<63x1xf32> to vector<63x256xf32>
    %99 = arith.mulf %97, %98 : vector<63x256xf32>
    %100 = vector.broadcast %3 : vector<63x1xf32> to vector<63x256xf32>
    %101 = arith.addf %99, %100 : vector<63x256xf32>
    %102 = arith.index_cast %73 : i32 to index
    %c0_32 = arith.constant 0 : index
    %c0_33 = arith.constant 0 : index
    %103 = vector.load %arg7[%102, %c0_32, %c0_33] : memref<3x63x256xf32, #tpu.memory_space<vmem>>, vector<1x63x256xf32>
    %104 = vector.shape_cast %103 : vector<1x63x256xf32> to vector<63x256xf32>
    %105 = vector.shape_cast %101 : vector<63x256xf32> to vector<1x63x256xf32>
    tpu.vector_store %arg7[%102, %c0_32, %c0_33], %105 {strides = array<i32>} : memref<3x63x256xf32, #tpu.memory_space<vmem>>, vector<1x63x256xf32>,
    %c3_i32 = arith.constant 3 : i32
    return
  }
  func.func @transform_0(%arg0: i32, %arg1: i32) -> (i32, i32, i32) {
    %c0_i32 = arith.constant 0 : i32
    %c0_i32_0 = arith.constant 0 : i32
    return %arg0, %c0_i32, %arg1 : i32, i32, i32
  }
  func.func @transform_1(%arg0: i32, %arg1: i32) -> (i32, i32) {
    %c0_i32 = arith.constant 0 : i32
    %c0_i32_0 = arith.constant 0 : i32
    %c0_i32_1 = arith.constant 0 : i32
    return %c0_i32, %c0_i32_0 : i32, i32
  }
  func.func @transform_2(%arg0: i32, %arg1: i32) -> (i32, i32) {
    %c0_i32 = arith.constant 0 : i32
    %c0_i32_0 = arith.constant 0 : i32
    %c0_i32_1 = arith.constant 0 : i32
    return %c0_i32, %c0_i32_0 : i32, i32
  }
  func.func @transform_3(%arg0: i32, %arg1: i32) -> (i32, i32) {
    %c0_i32 = arith.constant 0 : i32
    %c0_i32_0 = arith.constant 0 : i32
    %c0_i32_1 = arith.constant 0 : i32
    return %c0_i32, %c0_i32_0 : i32, i32
  }
  func.func @transform_4(%arg0: i32, %arg1: i32) -> (i32, i32) {
    %c0_i32 = arith.constant 0 : i32
    %c0_i32_0 = arith.constant 0 : i32
    %c0_i32_1 = arith.constant 0 : i32
    return %c0_i32, %c0_i32_0 : i32, i32
  }
  func.func @transform_5(%arg0: i32, %arg1: i32) -> (i32, i32, i32) {
    %c0_i32 = arith.constant 0 : i32
    %c0_i32_0 = arith.constant 0 : i32
    return %arg0, %c0_i32, %arg1 : i32, i32, i32
  }
}

</mosaic_0001>

<llo_original>
// kernel: tpu_custom_call.1
$region0: #{tpu_custom_call.1}
  #allocation0 [shape = 'u32[]', space=smem, size = 0x4, offset = 0x4, fixed_abs, tag = 'smem constant byte address 0x4 - core index']
  #allocation1 [shape = 'u32[144,128]{1,0:T(1,128)}', space=vmem, size = 0x12000, scoped, tag = 'internal scratch']
  %s0 = inlined_call_operand.hbm [shape: f32[10,63,256], index: 0, kind: input, shape index: {}]
  %s1 = inlined_call_operand.vmem [shape: f32[64,63], index: 1, kind: input, shape index: {}]
  %s2 = inlined_call_operand.vmem [shape: f32[64,1], index: 2, kind: input, shape index: {}]
  %s3 = inlined_call_operand.vmem [shape: f32[63,1], index: 3, kind: input, shape index: {}]
  %s4 = inlined_call_operand.vmem [shape: f32[63,1], index: 4, kind: input, shape index: {}]
  %s5 = inlined_call_operand.hbm [shape: f32[10,63,256], index: 5, kind: output, shape index: {}]
  %s6 = sld [smem:[#allocation0]]
  $region57: #{tpu_custom_call.1} parent=0
    _
  %s8 = ssub.s32 1, %s6
  %s9 = scalar_select 0, %s8, %s6
  $region1: #{tpu_custom_call.1} parent=0
    #allocation2 [shape = 'u8[393216]{0}', space=vmem, size = 0x60000, scoped, tag = 'input window, operand 0']
    #allocation3 [shape = 's32[2]{0}', space=sflag, size = 0x8, scoped, tag = 'scoped memory for tpu_custom_call.1']
    #allocation4 [shape = 's32[2]{0}', space=sflag, size = 0x8, scoped, tag = 'scoped memory for tpu_custom_call.1']
    #allocation5 [shape = 'u8[393216]{0}', space=vmem, size = 0x60000, scoped, tag = 'output window, operand 0']
    %10 = vsyncpa [#allocation3], 0
    %s11 = scalar_lea.sflag [#allocation3], 1
    %12 = vsyncpa %s11, 0
    %13 = vsyncpa [#allocation4], 0
    %s14 = scalar_lea.sflag [#allocation4], 1
    %15 = vsyncpa %s14, 0
    loop: start=0, step=1, limit=6
    $region2: #{tpu_custom_call.1} parent=1 // loop_pre_header
      _
    $region3: #{tpu_custom_call.1} parent=1 // loop_header
      %s17 = sphi 0, %s21
      %p18 = scmp.ge.s32.totalorder %s17, 6
      %s24 = sphi 0, %s36
      %s25 = sphi 0, %s32
      %s26 = sphi 0, %s24
      %s27 = sphi 0, %s25
      %s28 = sphi 0, %s26
      %s29 = sphi 0, %s27
      %s41 = sphi 0, %s43
      %s44 = sphi 0, %s41
      %s45 = sphi 0, %s44
      %s61 = sphi 0, %s45
      %s65 = sphi 0, %s65
      %s67 = sphi 0, %s65
      %s68 = sphi 0, %s67
      %s82 = sphi 0, %s68
      %s86 = sphi 0, %s86
      %s88 = sphi 0, %s86
      %s89 = sphi 0, %s88
      %s103 = sphi 0, %s89
      %s107 = sphi 0, %s107
      %s109 = sphi 0, %s107
      %s110 = sphi 0, %s109
      %s124 = sphi 0, %s110
      %s128 = sphi 0, %s128
      %s130 = sphi 0, %s128
      %s131 = sphi 0, %s130
      %s145 = sphi 0, %s131
      %s153 = sphi 0, %s155
      %s156 = sphi 0, %s153
      %s157 = sphi 0, %s156
      %s173 = sphi 0, %s157
    $region4: #{tpu_custom_call.1} parent=1 // loop_header_branch
      %20 = sbr.rel (%p18) target = $region8
    $region5: #{tpu_custom_call.1} parent=1 // loop_body
      %s22 = ssub.s32 %s17, 1
      %s23 = ssub.s32 %s17, 2
      %s30 = sadd.s32 1, %s25
      %p31 = scmp.ge.s32.totalorder %s30, 1
      %s32 = scalar_select %p31, 0, %s30
      %s33 = sadd.s32 1, %s24
      %s34 = scalar_select %p31, %s33, %s24
      %p35 = scmp.ge.s32.totalorder %s34, 4
      %s36 = scalar_select %p35, 0, %s34
      %s37 = ssub.s32 %s24, %s36
      %s38 = ssub.s32 %s25, %s32
      %s39 = sor.u32 %s37, %s38
      %p40 = scmp.eq.s32.totalorder %s39, 0
      %s42 = sadd.s32 %s41, 1
      %s43 = scalar_select %p40, %s41, %s42
      %p46 = pneg %p40
      %p47 = scmp.eq.s32.totalorder %s17, 3
      %p48 = por %p46, %p47
      %p49 = scmp.ne.s32.totalorder %s41, %s44
      %p50 = scmp.eq.s32.totalorder %s17, 0
      %p51 = por %p49, %p50
      %p52 = scmp.ne.s32.totalorder %s41, %s44
      %p53 = scmp.eq.s32.totalorder %s22, 3
      %p54 = por %p52, %p53
      %p55 = scmp.ne.s32.totalorder %s44, %s45
      %p56 = scmp.eq.s32.totalorder %s22, 0
      %p57 = por %p55, %p56
      %p58 = scmp.ne.s32.totalorder %s44, %s45
      %p59 = scmp.eq.s32.totalorder %s23, 3
      %p60 = por %p58, %p59
      %p62 = scmp.ne.s32.totalorder %s45, %s61
      %p63 = scmp.eq.s32.totalorder %s23, 0
      %p64 = por %p62, %p63
      %s66 = sadd.s32 %s65, 1
      %p69 = scmp.eq.s32.totalorder %s17, 3
      %p70 = scmp.ne.s32.totalorder %s65, %s67
      %p71 = scmp.eq.s32.totalorder %s17, 0
      %p72 = por %p70, %p71
      %p73 = scmp.ne.s32.totalorder %s65, %s67
      %p74 = scmp.eq.s32.totalorder %s22, 3
      %p75 = por %p73, %p74
      %p76 = scmp.ne.s32.totalorder %s67, %s68
      %p77 = scmp.eq.s32.totalorder %s22, 0
      %p78 = por %p76, %p77
      %p79 = scmp.ne.s32.totalorder %s67, %s68
      %p80 = scmp.eq.s32.totalorder %s23, 3
      %p81 = por %p79, %p80
      %p83 = scmp.ne.s32.totalorder %s68, %s82
      %p84 = scmp.eq.s32.totalorder %s23, 0
      %p85 = por %p83, %p84
      %s87 = sadd.s32 %s86, 1
      %p90 = scmp.eq.s32.totalorder %s17, 3
      %p91 = scmp.ne.s32.totalorder %s86, %s88
      %p92 = scmp.eq.s32.totalorder %s17, 0
      %p93 = por %p91, %p92
      %p94 = scmp.ne.s32.totalorder %s86, %s88
      %p95 = scmp.eq.s32.totalorder %s22, 3
      %p96 = por %p94, %p95
      %p97 = scmp.ne.s32.totalorder %s88, %s89
      %p98 = scmp.eq.s32.totalorder %s22, 0
      %p99 = por %p97, %p98
      %p100 = scmp.ne.s32.totalorder %s88, %s89
      %p101 = scmp.eq.s32.totalorder %s23, 3
      %p102 = por %p100, %p101
      %p104 = scmp.ne.s32.totalorder %s89, %s103
      %p105 = scmp.eq.s32.totalorder %s23, 0
      %p106 = por %p104, %p105
      %s108 = sadd.s32 %s107, 1
      %p111 = scmp.eq.s32.totalorder %s17, 3
      %p112 = scmp.ne.s32.totalorder %s107, %s109
      %p113 = scmp.eq.s32.totalorder %s17, 0
      %p114 = por %p112, %p113
      %p115 = scmp.ne.s32.totalorder %s107, %s109
      %p116 = scmp.eq.s32.totalorder %s22, 3
      %p117 = por %p115, %p116
      %p118 = scmp.ne.s32.totalorder %s109, %s110
      %p119 = scmp.eq.s32.totalorder %s22, 0
      %p120 = por %p118, %p119
      %p121 = scmp.ne.s32.totalorder %s109, %s110
      %p122 = scmp.eq.s32.totalorder %s23, 3
      %p123 = por %p121, %p122
      %p125 = scmp.ne.s32.totalorder %s110, %s124
      %p126 = scmp.eq.s32.totalorder %s23, 0
      %p127 = por %p125, %p126
      %s129 = sadd.s32 %s128, 1
      %p132 = scmp.eq.s32.totalorder %s17, 3
      %p133 = scmp.ne.s32.totalorder %s128, %s130
      %p134 = scmp.eq.s32.totalorder %s17, 0
      %p135 = por %p133, %p134
      %p136 = scmp.ne.s32.totalorder %s128, %s130
      %p137 = scmp.eq.s32.totalorder %s22, 3
      %p138 = por %p136, %p137
      %p139 = scmp.ne.s32.totalorder %s130, %s131
      %p140 = scmp.eq.s32.totalorder %s22, 0
      %p141 = por %p139, %p140
      %p142 = scmp.ne.s32.totalorder %s130, %s131
      %p143 = scmp.eq.s32.totalorder %s23, 3
      %p144 = por %p142, %p143
      %p146 = scmp.ne.s32.totalorder %s131, %s145
      %p147 = scmp.eq.s32.totalorder %s23, 0
      %p148 = por %p146, %p147
      %s149 = ssub.s32 %s24, %s36
      %s150 = ssub.s32 %s25, %s32
      %s151 = sor.u32 %s149, %s150
      %p152 = scmp.eq.s32.totalorder %s151, 0
      %s154 = sadd.s32 %s153, 1
      %s155 = scalar_select %p152, %s153, %s154
      %p158 = pneg %p152
      %p159 = scmp.eq.s32.totalorder %s17, 3
      %p160 = por %p158, %p159
      %p161 = scmp.ne.s32.totalorder %s153, %s156
      %p162 = scmp.eq.s32.totalorder %s17, 0
      %p163 = por %p161, %p162
      %p164 = scmp.ne.s32.totalorder %s153, %s156
      %p165 = scmp.eq.s32.totalorder %s22, 3
      %p166 = por %p164, %p165
      %p167 = scmp.ne.s32.totalorder %s156, %s157
      %p168 = scmp.eq.s32.totalorder %s22, 0
      %p169 = por %p167, %p168
      %p170 = scmp.ne.s32.totalorder %s156, %s157
      %p171 = scmp.eq.s32.totalorder %s23, 3
      %p172 = por %p170, %p171
      %p174 = scmp.ne.s32.totalorder %s157, %s173
      %p175 = scmp.eq.s32.totalorder %s23, 0
      %p176 = por %p174, %p175
      %p177 = scmp.le.s32.totalorder 1, %s17
      %p178 = scmp.lt.s32.totalorder %s17, 5
      %p179 = pnand %p177, %p178
      %p180 = pneg %p179
      // Predicated region
      $region9: #{tpu_custom_call.1} parent=5 // pred_check
        _
      $region10: #{tpu_custom_call.1} parent=5 // pred_check_branch
        %182 = sbr.rel (%p179) target = $region12
      $region11: #{tpu_custom_call.1} parent=5 // pred_region
        %s183 = ssub.s32 %s17, 1
        // Predicated region
        $region13: #{tpu_custom_call.1} parent=11 // pred_check
          %p184 = pneg %p78
        $region14: #{tpu_custom_call.1} parent=11 // pred_check_branch
          %186 = sbr.rel (%p184) target = $region16
        $region15: #{tpu_custom_call.1} parent=11 // pred_region
          _
        $region16: #{tpu_custom_call.1} parent=11 // pred_fallthru
          _
        // Predicated region
        $region17: #{tpu_custom_call.1} parent=11 // pred_check
          %p187 = pneg %p99
        $region18: #{tpu_custom_call.1} parent=11 // pred_check_branch
          %189 = sbr.rel (%p187) target = $region20
        $region19: #{tpu_custom_call.1} parent=11 // pred_region
          _
        $region20: #{tpu_custom_call.1} parent=11 // pred_fallthru
          _
        // Predicated region
        $region21: #{tpu_custom_call.1} parent=11 // pred_check
          %p190 = pneg %p120
        $region22: #{tpu_custom_call.1} parent=11 // pred_check_branch
          %192 = sbr.rel (%p190) target = $region24
        $region23: #{tpu_custom_call.1} parent=11 // pred_region
          _
        $region24: #{tpu_custom_call.1} parent=11 // pred_fallthru
          _
        // Predicated region
        $region25: #{tpu_custom_call.1} parent=11 // pred_check
          %p193 = pneg %p141
        $region26: #{tpu_custom_call.1} parent=11 // pred_check_branch
          %195 = sbr.rel (%p193) target = $region28
        $region27: #{tpu_custom_call.1} parent=11 // pred_region
          _
        $region28: #{tpu_custom_call.1} parent=11 // pred_fallthru
          _
      $region12: #{tpu_custom_call.1} parent=5 // pred_fallthru
        _
      %p196 = scmp.lt.s32.totalorder %s17, 4
      // Predicated region
      $region29: #{tpu_custom_call.1} parent=5 // pred_check
        %p197 = pneg %p196
      $region30: #{tpu_custom_call.1} parent=5 // pred_check_branch
        %199 = sbr.rel (%p197) target = $region32
      $region31: #{tpu_custom_call.1} parent=5 // pred_region
        // Predicated region
        $region33: #{tpu_custom_call.1} parent=31 // pred_check
          %p200 = pneg %p51
        $region34: #{tpu_custom_call.1} parent=31 // pred_check_branch
          %202 = sbr.rel (%p200) target = $region36
        $region35: #{tpu_custom_call.1} parent=31 // pred_region
          %s203 = sand.u32 %s41, 1
          %s204 = scalar_lea.sflag [#allocation3], %s203
          %s205 = sand.u32 %s41, 1
          %s206 = smul.addr %s205, 384
          %s207 = scalar_lea.vmem [#allocation2], %s206
          %s208 = smul.u32 3, %s24
          %s209 = smul.u32 2, %s25
          %s210 = ssub.s32 10, %s208
          %p211 = scmp.lt.s32.totalorder %s210, 3
          %s212 = scalar_select %p211, %s210, 3
          %s213 = smul.u32 128, %s212
          %s214 = smul.u32 %s213, 8
          %s215 = smul.u32 %s214, 2
          %s217 = ssub.s32 6144, %s215
          %218 = vsyncadd %s204, %s217
          %p219 = scmp.ne.s32.totalorder 0, %s215
          %s220 = smul.addr %s208, 16
          %s221 = sadd.s32 %s209, %s220
          %s222 = smul.addr %s221, 128
          %s223 = scalar_lea.hbm %s0, %s222
          %s224 = smul.u32 %s212, 8
          %s225 = smul.u32 16, %s224
          %s226 = sshll.u32 %s207, 4
          %s227 = int_to_ptr.vmem [resolvable:$true] %s226
          %s228 = sshll.u32 %s225, 4
          %232 = dma.hbm_to_vmem [thread:$0]  (%p219), %s223, %s228, %s227, %s204, 256, 256, 16
        $region36: #{tpu_custom_call.1} parent=31 // pred_fallthru
          _
      $region32: #{tpu_custom_call.1} parent=5 // pred_fallthru
        _
      %p233 = scmp.le.s32.totalorder 1, %s17
      %p234 = scmp.lt.s32.totalorder %s17, 5
      %p235 = pnand %p233, %p234
      %p236 = pneg %p235
      // Predicated region
      $region37: #{tpu_custom_call.1} parent=5 // pred_check
        _
      $region38: #{tpu_custom_call.1} parent=5 // pred_check_branch
        %238 = sbr.rel (%p235) target = $region40
      $region39: #{tpu_custom_call.1} parent=5 // pred_region
        %s239 = ssub.s32 %s17, 1
        %s240 = sand.u32 %s44, 1
        %s241 = scalar_lea.sflag [#allocation3], %s240
        %s242 = sand.u32 %s44, 1
        %s243 = smul.addr %s242, 384
        %s244 = scalar_lea.vmem [#allocation2], %s243
        // Predicated region
        $region41: #{tpu_custom_call.1} parent=39 // pred_check
          %p245 = pneg %p57
        $region42: #{tpu_custom_call.1} parent=39 // pred_check_branch
          %247 = sbr.rel (%p245) target = $region44
        $region43: #{tpu_custom_call.1} parent=39 // pred_region
          %248 = dma.done %s241, 6144
        $region44: #{tpu_custom_call.1} parent=39 // pred_fallthru
          _
        %s249 = sand.u32 %s44, 1
        %s250 = scalar_lea.sflag [#allocation3], %s249
        %s251 = sand.u32 %s44, 1
        %s252 = smul.addr %s251, 384
        %s253 = scalar_lea.vmem [#allocation2], %s252
        %p254 = pneg %p57
        %p255 = pneg %p54
        %p256 = pneg %p78
        %p257 = pneg %p75
        %p258 = pneg %p99
        %p259 = pneg %p96
        %p260 = pneg %p120
        %p261 = pneg %p117
        %p262 = pneg %p141
        %p263 = pneg %p138
        %p264 = pneg %p169
        %p265 = pneg %p166
        %s266 = sand.u32 %s156, 1
        %s267 = scalar_lea.sflag [#allocation4], %s266
        %s268 = sand.u32 %s156, 1
        %s269 = smul.addr %s268, 384
        %s270 = scalar_lea.vmem [#allocation5], %s269
        %s271 = smul.u32 3, %s26
        %s272 = smul.u32 2, %s27
        %s273 = ssub.s32 10, %s271
        %p274 = scmp.lt.s32.totalorder %s273, 3
        %s275 = scalar_select %p274, %s273, 3
        %s276 = smul.u32 128, %s275
        %s277 = smul.u32 %s276, 8
        %s278 = smul.u32 %s277, 2
        %s279 = smul.u32 3, %s26
        %s280 = smul.u32 2, %s27
        %s281 = ssub.s32 10, %s279
        %p282 = scmp.lt.s32.totalorder %s281, 3
        %s283 = scalar_select %p282, %s281, 3
        %s284 = smul.u32 128, %s283
        %s285 = smul.u32 %s284, 8
        %s286 = smul.u32 %s285, 2
        %v287 = vld [vmem:[%s1] sm:$0xff]
        %v288 = vld [vmem:[%s1 + $0x8] sm:$0xff]
        %v289 = vld [vmem:[%s1 + $0x10] sm:$0xff]
        %v290 = vld [vmem:[%s1 + $0x18] sm:$0xff]
        %v291 = vld [vmem:[%s1 + $0x20] sm:$0xff]
        %v292 = vld [vmem:[%s1 + $0x28] sm:$0xff]
        %v293 = vld [vmem:[%s1 + $0x30] sm:$0xff]
        %v294 = vld [vmem:[%s1 + $0x38] sm:$0xff]
        %v295 = vld [vmem:[%s2] sm:$0xff]
        %v296 = vld [vmem:[%s2 + $0x8] sm:$0xff]
        %v297 = vld [vmem:[%s2 + $0x10] sm:$0xff]
        %v298 = vld [vmem:[%s2 + $0x18] sm:$0xff]
        %v299 = vld [vmem:[%s2 + $0x20] sm:$0xff]
        %v300 = vld [vmem:[%s2 + $0x28] sm:$0xff]
        %v301 = vld [vmem:[%s2 + $0x30] sm:$0xff]
        %v302 = vld [vmem:[%s2 + $0x38] sm:$0xff]
        %v303 = vld [vmem:[%s3] sm:$0xff]
        %v304 = vld [vmem:[%s3 + $0x8] sm:$0xff]
        %v305 = vld [vmem:[%s3 + $0x10] sm:$0xff]
        %v306 = vld [vmem:[%s3 + $0x18] sm:$0xff]
        %v307 = vld [vmem:[%s3 + $0x20] sm:$0xff]
        %v308 = vld [vmem:[%s3 + $0x28] sm:$0xff]
        %v309 = vld [vmem:[%s3 + $0x30] sm:$0xff]
        %v310 = vld [vmem:[%s3 + $0x38] sm:$0x7f]
        %v311 = vld [vmem:[%s4] sm:$0xff]
        %v312 = vld [vmem:[%s4 + $0x8] sm:$0xff]
        %v313 = vld [vmem:[%s4 + $0x10] sm:$0xff]
        %v314 = vld [vmem:[%s4 + $0x18] sm:$0xff]
        %v315 = vld [vmem:[%s4 + $0x20] sm:$0xff]
        %v316 = vld [vmem:[%s4 + $0x28] sm:$0xff]
        %v317 = vld [vmem:[%s4 + $0x30] sm:$0xff]
        %v318 = vld [vmem:[%s4 + $0x38] sm:$0x7f]
        %v319 = vld [vmem:[%s244] sm:$0xff]
        %v320 = vld [vmem:[%s244 + $0x8] sm:$0xff]
        %v321 = vld [vmem:[%s244 + $0x10] sm:$0xff]
        %v322 = vld [vmem:[%s244 + $0x18] sm:$0xff]
        %v323 = vld [vmem:[%s244 + $0x20] sm:$0xff]
        %v324 = vld [vmem:[%s244 + $0x28] sm:$0xff]
        %v325 = vld [vmem:[%s244 + $0x30] sm:$0xff]
        %v326 = vld [vmem:[%s244 + $0x38] sm:$0xff]
        %v327 = vld [vmem:[%s244 + $0x40] sm:$0xff]
        %v328 = vld [vmem:[%s244 + $0x48] sm:$0xff]
        %v329 = vld [vmem:[%s244 + $0x50] sm:$0xff]
        %v330 = vld [vmem:[%s244 + $0x58] sm:$0xff]
        %v331 = vld [vmem:[%s244 + $0x60] sm:$0xff]
        %v332 = vld [vmem:[%s244 + $0x68] sm:$0xff]
        %v333 = vld [vmem:[%s244 + $0x70] sm:$0x7f]
        %v334 = vld [vmem:[%s244 + $0x78] sm:$0x7f]
        %336 = vset.pattern.permute.xlu0 0
        %337 = vperm.xlu0 %336, %v295
        %v338 = vpop.permute.xlu0 %337
        %341 = vset.pattern.permute.xlu0 0
        %342 = vperm.xlu0 %341, %v296
        %v343 = vpop.permute.xlu0 %342
        %346 = vset.pattern.permute.xlu0 0
        %347 = vperm.xlu0 %346, %v297
        %v348 = vpop.permute.xlu0 %347
        %351 = vset.pattern.permute.xlu0 0
        %352 = vperm.xlu0 %351, %v298
        %v353 = vpop.permute.xlu0 %352
        %356 = vset.pattern.permute.xlu0 0
        %357 = vperm.xlu0 %356, %v299
        %v358 = vpop.permute.xlu0 %357
        %361 = vset.pattern.permute.xlu0 0
        %362 = vperm.xlu0 %361, %v300
        %v363 = vpop.permute.xlu0 %362
        %366 = vset.pattern.permute.xlu0 0
        %367 = vperm.xlu0 %366, %v301
        %v368 = vpop.permute.xlu0 %367
        %371 = vset.pattern.permute.xlu0 0
        %372 = vperm.xlu0 %371, %v302
        %v373 = vpop.permute.xlu0 %372
        %vm375 = vcmask 515072
        %v377 = vsel %vm375, %v287, 0
        %v380 = vsel %vm375, %v288, 0
        %v383 = vsel %vm375, %v289, 0
        %v386 = vsel %vm375, %v290, 0
        %v389 = vsel %vm375, %v291, 0
        %v392 = vsel %vm375, %v292, 0
        %v395 = vsel %vm375, %v293, 0
        %v398 = vsel %vm375, %v294, 0
        %vm400 = vcmask 1046528
        %v402 = vsel %vm400, %v333, 0
        %v405 = vsel %vm400, %v334, 0
        %407 = vmatprep.subr.mxu0 %v320
        %408 = vmatpush1.msra.mxu0 %v319
        %409 = vmatprep.subr.mxu0 %v322
        %410 = vmatpush1.msra.mxu0 %v321
        %411 = vmatprep.subr.mxu0 %v324
        %412 = vmatpush1.msra.mxu0 %v323
        %413 = vmatprep.subr.mxu0 %v326
        %414 = vmatpush1.msra.mxu0 %v325
        %415 = vmatprep.subr.mxu0 %v328
        %416 = vmatpush1.msra.mxu0 %v327
        %417 = vmatprep.subr.mxu0 %v330
        %418 = vmatpush1.msra.mxu0 %v329
        %419 = vmatprep.subr.mxu0 %v332
        %420 = vmatpush1.msra.mxu0 %v331
        %421 = vmatprep.subr.mxu0 %v405
        %422 = vmatpush1.msra.mxu0 %v402
        %423 = vmatprep.subr.mxu0 0.0
        %424 = vmatpush1.msra.mxu0 0.0
        %425 = vmatprep.subr.mxu0 0.0
        %426 = vmatpush1.msra.mxu0 0.0
        %427 = vmatprep.subr.mxu0 0.0
        %428 = vmatpush1.msra.mxu0 0.0
        %429 = vmatprep.subr.mxu0 0.0
        %430 = vmatpush1.msra.mxu0 0.0
        %431 = vmatprep.subr.mxu0 0.0
        %432 = vmatpush1.msra.mxu0 0.0
        %433 = vmatprep.subr.mxu0 0.0
        %434 = vmatpush1.msra.mxu0 0.0
        %435 = vmatprep.subr.mxu0 0.0
        %436 = vmatpush1.msra.mxu0 0.0
        %437 = vmatprep.subr.mxu0 0.0
        %438 = vmatpush1.msra.mxu0 0.0
        %439 = vmatprep.subr.mxu0 0.0
        %440 = vmatpush1.msra.mxu0 0.0
        %441 = vmatprep.subr.mxu0 0.0
        %442 = vmatpush1.msra.mxu0 0.0
        %443 = vmatprep.subr.mxu0 0.0
        %444 = vmatpush1.msra.mxu0 0.0
        %445 = vmatprep.subr.mxu0 0.0
        %446 = vmatpush1.msra.mxu0 0.0
        %447 = vmatprep.subr.mxu0 0.0
        %448 = vmatpush1.msra.mxu0 0.0
        %449 = vmatprep.subr.mxu0 0.0
        %450 = vmatpush1.msra.mxu0 0.0
        %451 = vmatprep.subr.mxu0 0.0
        %452 = vmatpush1.msra.mxu0 0.0
        %453 = vmatprep.subr.mxu0 0.0
        %454 = vmatpush1.msra.mxu0 0.0
        %455 = vmatprep.subr.mxu0 0.0
        %456 = vmatpush1.msra.mxu0 0.0
        %457 = vmatprep.subr.mxu0 0.0
        %458 = vmatpush1.msra.mxu0 0.0
        %459 = vmatprep.subr.mxu0 0.0
        %460 = vmatpush1.msra.mxu0 0.0
        %461 = vmatprep.subr.mxu0 0.0
        %462 = vmatpush1.msra.mxu0 0.0
        %463 = vmatprep.subr.mxu0 0.0
        %464 = vmatpush1.msra.mxu0 0.0
        %465 = vmatprep.subr.mxu0 0.0
        %466 = vmatpush1.msra.mxu0 0.0
        %467 = vmatprep.subr.mxu0 0.0
        %468 = vmatpush1.msra.mxu0 0.0
        %469 = vmatprep.subr.mxu0 0.0
        %470 = vmatpush1.msra.mxu0 0.0
        %471 = vmatprep.mubr.f32.mxu0 0.0
        %472 = vmatmul.mubr.f32.gmra.mrb[0].mxu0 %v377
        %v473 = vpop.f32.mrb[0].mxu0
        %v474 = vadd.f32 %v338, %v473
        %v475 = vpop.f32.mrb[0].mxu0
        %v476 = vadd.f32 %v338, %v475
        %477 = vmatprep.mubr.f32.mxu0 0.0
        %478 = vmatmul.mubr.f32.gmra.mrb[0].mxu0 %v380
        %v479 = vpop.f32.mrb[0].mxu0
        %v480 = vadd.f32 %v343, %v479
        %v481 = vpop.f32.mrb[0].mxu0
        %v482 = vadd.f32 %v343, %v481
        %483 = vmatprep.mubr.f32.mxu0 0.0
        %484 = vmatmul.mubr.f32.gmra.mrb[0].mxu0 %v383
        %v485 = vpop.f32.mrb[0].mxu0
        %v486 = vadd.f32 %v348, %v485
        %v487 = vpop.f32.mrb[0].mxu0
        %v488 = vadd.f32 %v348, %v487
        %489 = vmatprep.mubr.f32.mxu0 0.0
        %490 = vmatmul.mubr.f32.gmra.mrb[0].mxu0 %v386
        %v491 = vpop.f32.mrb[0].mxu0
        %v492 = vadd.f32 %v353, %v491
        %v493 = vpop.f32.mrb[0].mxu0
        %v494 = vadd.f32 %v353, %v493
        %495 = vmatprep.mubr.f32.mxu0 0.0
        %496 = vmatmul.mubr.f32.gmra.mrb[0].mxu0 %v389
        %v497 = vpop.f32.mrb[0].mxu0
        %v498 = vadd.f32 %v358, %v497
        %v499 = vpop.f32.mrb[0].mxu0
        %v500 = vadd.f32 %v358, %v499
        %501 = vmatprep.mubr.f32.mxu0 0.0
        %502 = vmatmul.mubr.f32.gmra.mrb[0].mxu0 %v392
        %v503 = vpop.f32.mrb[0].mxu0
        %v504 = vadd.f32 %v363, %v503
        %v505 = vpop.f32.mrb[0].mxu0
        %v506 = vadd.f32 %v363, %v505
        %507 = vmatprep.mubr.f32.mxu0 0.0
        %508 = vmatmul.mubr.f32.gmra.mrb[0].mxu0 %v395
        %v509 = vpop.f32.mrb[0].mxu0
        %v510 = vadd.f32 %v368, %v509
        %v511 = vpop.f32.mrb[0].mxu0
        %v512 = vadd.f32 %v368, %v511
        %513 = vmatprep.mubr.f32.mxu0 0.0
        %514 = vmatmul.mubr.f32.gmra.mrb[0].mxu0 %v398
        %v515 = vpop.f32.mrb[0].mxu0
        %v516 = vadd.f32 %v373, %v515
        %v517 = vpop.f32.mrb[0].mxu0
        %v518 = vadd.f32 %v373, %v517
        %519 = vdwg.mxu0
        %v520 = vmul.f32 %v474, %v474
        %v521 = vmul.f32 %v476, %v476
        %v522 = vmul.f32 %v480, %v480
        %v523 = vmul.f32 %v482, %v482
        %v524 = vmul.f32 %v486, %v486
        %v525 = vmul.f32 %v488, %v488
        %v526 = vmul.f32 %v492, %v492
        %v527 = vmul.f32 %v494, %v494
        %v528 = vmul.f32 %v498, %v498
        %v529 = vmul.f32 %v500, %v500
        %v530 = vmul.f32 %v504, %v504
        %v531 = vmul.f32 %v506, %v506
        %v532 = vmul.f32 %v510, %v510
        %v533 = vmul.f32 %v512, %v512
        %v534 = vmul.f32 %v516, %v516
        %v535 = vmul.f32 %v518, %v518
        %v536 = vadd.f32 %v520, %v522
        %v537 = vadd.f32 %v536, %v524
        %v538 = vadd.f32 %v537, %v526
        %v539 = vadd.f32 %v538, %v528
        %v540 = vadd.f32 %v539, %v530
        %v541 = vadd.f32 %v540, %v532
        %v542 = vadd.f32 %v541, %v534
        %v543 = vrot.slane %v542, 4
        %v544 = vadd.f32 %v542, %v543
        %v545 = vrot.slane %v544, 2
        %v546 = vadd.f32 %v544, %v545
        %v547 = vrot.slane %v546, 1
        %v548 = vadd.f32 %v546, %v547
        %v549 = vadd.f32 %v521, %v523
        %v550 = vadd.f32 %v549, %v525
        %v551 = vadd.f32 %v550, %v527
        %v552 = vadd.f32 %v551, %v529
        %v553 = vadd.f32 %v552, %v531
        %v554 = vadd.f32 %v553, %v533
        %v555 = vadd.f32 %v554, %v535
        %v556 = vrot.slane %v555, 4
        %v557 = vadd.f32 %v555, %v556
        %v558 = vrot.slane %v557, 2
        %v559 = vadd.f32 %v557, %v558
        %v560 = vrot.slane %v559, 1
        %v561 = vadd.f32 %v559, %v560
        %v562 = vsub.f32 %v548, %v534
        %v563 = vsub.f32 %v561, %v535
        %v564 = vmul.f32 %v562, 0.015873017
        %v565 = vmul.f32 %v563, 0.015873017
        %v566 = vsub.f32 %v564, %v534
        %v567 = vsub.f32 %v565, %v535
        %v568 = vlaneseq
        %v569 = vshrl.u32 %v568, 7
        %v570 = vsub.s32 7, %v569
        %v571 = vrot.slane %v516, %v570
        %v572 = vlaneseq
        %v573 = vshrl.u32 %v572, 7
        %v574 = vsub.s32 7, %v573
        %v575 = vrot.slane %v518, %v574
        %v576 = vsub.f32 %v474, %v571
        %v577 = vsub.f32 %v476, %v575
        %v578 = vsub.f32 %v480, %v571
        %v579 = vsub.f32 %v482, %v575
        %v580 = vsub.f32 %v486, %v571
        %v581 = vsub.f32 %v488, %v575
        %v582 = vsub.f32 %v492, %v571
        %v583 = vsub.f32 %v494, %v575
        %v584 = vsub.f32 %v498, %v571
        %v585 = vsub.f32 %v500, %v575
        %v586 = vsub.f32 %v504, %v571
        %v587 = vsub.f32 %v506, %v575
        %v588 = vsub.f32 %v510, %v571
        %v589 = vsub.f32 %v512, %v575
        %v590 = vsub.f32 %v516, %v571
        %v591 = vsub.f32 %v518, %v575
        %v592 = vadd.f32 %v566, 1e-05
        %v593 = vadd.f32 %v567, 1e-05
        %v594 = vrsqrt.pop %v592
        %v595 = vrsqrt.pop %v593
        %v596 = vlaneseq
        %v597 = vshrl.u32 %v596, 7
        %v598 = vsub.s32 7, %v597
        %v599 = vrot.slane %v594, %v598
        %v600 = vlaneseq
        %v601 = vshrl.u32 %v600, 7
        %v602 = vsub.s32 7, %v601
        %v603 = vrot.slane %v595, %v602
        %v604 = vmul.f32 %v576, %v599
        %v605 = vmul.f32 %v577, %v603
        %v606 = vmul.f32 %v578, %v599
        %v607 = vmul.f32 %v579, %v603
        %v608 = vmul.f32 %v580, %v599
        %v609 = vmul.f32 %v581, %v603
        %v610 = vmul.f32 %v582, %v599
        %v611 = vmul.f32 %v583, %v603
        %v612 = vmul.f32 %v584, %v599
        %v613 = vmul.f32 %v585, %v603
        %v614 = vmul.f32 %v586, %v599
        %v615 = vmul.f32 %v587, %v603
        %v616 = vmul.f32 %v588, %v599
        %v617 = vmul.f32 %v589, %v603
        %v618 = vmul.f32 %v590, %v599
        %v619 = vmul.f32 %v591, %v603
        %621 = vset.pattern.permute.xlu0 0
        %622 = vperm.xlu0 %621, %v303
        %v623 = vpop.permute.xlu0 %622
        %626 = vset.pattern.permute.xlu0 0
        %627 = vperm.xlu0 %626, %v304
        %v628 = vpop.permute.xlu0 %627
        %631 = vset.pattern.permute.xlu0 0
        %632 = vperm.xlu0 %631, %v305
        %v633 = vpop.permute.xlu0 %632
        %636 = vset.pattern.permute.xlu0 0
        %637 = vperm.xlu0 %636, %v306
        %v638 = vpop.permute.xlu0 %637
        %641 = vset.pattern.permute.xlu0 0
        %642 = vperm.xlu0 %641, %v307
        %v643 = vpop.permute.xlu0 %642
        %646 = vset.pattern.permute.xlu0 0
        %647 = vperm.xlu0 %646, %v308
        %v648 = vpop.permute.xlu0 %647
        %651 = vset.pattern.permute.xlu0 0
        %652 = vperm.xlu0 %651, %v309
        %v653 = vpop.permute.xlu0 %652
        %656 = vset.pattern.permute.xlu0 0
        %657 = vperm.xlu0 %656, %v310
        %v658 = vpop.permute.xlu0 %657
        %v660 = vmul.f32 %v604, %v623
        %v661 = vmul.f32 %v605, %v623
        %v662 = vmul.f32 %v606, %v628
        %v663 = vmul.f32 %v607, %v628
        %v664 = vmul.f32 %v608, %v633
        %v665 = vmul.f32 %v609, %v633
        %v666 = vmul.f32 %v610, %v638
        %v667 = vmul.f32 %v611, %v638
        %v668 = vmul.f32 %v612, %v643
        %v669 = vmul.f32 %v613, %v643
        %v670 = vmul.f32 %v614, %v648
        %v671 = vmul.f32 %v615, %v648
        %v672 = vmul.f32 %v616, %v653
        %v673 = vmul.f32 %v617, %v653
        %v674 = vmul.f32 %v618, %v658
        %v675 = vmul.f32 %v619, %v658
        %677 = vset.pattern.permute.xlu0 0
        %678 = vperm.xlu0 %677, %v311
        %v679 = vpop.permute.xlu0 %678
        %682 = vset.pattern.permute.xlu0 0
        %683 = vperm.xlu0 %682, %v312
        %v684 = vpop.permute.xlu0 %683
        %687 = vset.pattern.permute.xlu0 0
        %688 = vperm.xlu0 %687, %v313
        %v689 = vpop.permute.xlu0 %688
        %692 = vset.pattern.permute.xlu0 0
        %693 = vperm.xlu0 %692, %v314
        %v694 = vpop.permute.xlu0 %693
        %697 = vset.pattern.permute.xlu0 0
        %698 = vperm.xlu0 %697, %v315
        %v699 = vpop.permute.xlu0 %698
        %702 = vset.pattern.permute.xlu0 0
        %703 = vperm.xlu0 %702, %v316
        %v704 = vpop.permute.xlu0 %703
        %707 = vset.pattern.permute.xlu0 0
        %708 = vperm.xlu0 %707, %v317
        %v709 = vpop.permute.xlu0 %708
        %712 = vset.pattern.permute.xlu0 0
        %713 = vperm.xlu0 %712, %v318
        %v714 = vpop.permute.xlu0 %713
        %v716 = vadd.f32 %v660, %v679
        %v717 = vadd.f32 %v661, %v679
        %v718 = vadd.f32 %v662, %v684
        %v719 = vadd.f32 %v663, %v684
        %v720 = vadd.f32 %v664, %v689
        %v721 = vadd.f32 %v665, %v689
        %v722 = vadd.f32 %v666, %v694
        %v723 = vadd.f32 %v667, %v694
        %v724 = vadd.f32 %v668, %v699
        %v725 = vadd.f32 %v669, %v699
        %v726 = vadd.f32 %v670, %v704
        %v727 = vadd.f32 %v671, %v704
        %v728 = vadd.f32 %v672, %v709
        %v729 = vadd.f32 %v673, %v709
        %v730 = vadd.f32 %v674, %v714
        %v731 = vadd.f32 %v675, %v714
        %732 = vst [vmem:[%s270] sm:$0xff] %v716
        %733 = vst [vmem:[%s270 + $0x8] sm:$0xff] %v717
        %734 = vst [vmem:[%s270 + $0x10] sm:$0xff] %v718
        %735 = vst [vmem:[%s270 + $0x18] sm:$0xff] %v719
        %736 = vst [vmem:[%s270 + $0x20] sm:$0xff] %v720
        %737 = vst [vmem:[%s270 + $0x28] sm:$0xff] %v721
        %738 = vst [vmem:[%s270 + $0x30] sm:$0xff] %v722
        %739 = vst [vmem:[%s270 + $0x38] sm:$0xff] %v723
        %740 = vst [vmem:[%s270 + $0x40] sm:$0xff] %v724
        %741 = vst [vmem:[%s270 + $0x48] sm:$0xff] %v725
        %742 = vst [vmem:[%s270 + $0x50] sm:$0xff] %v726
        %743 = vst [vmem:[%s270 + $0x58] sm:$0xff] %v727
        %744 = vst [vmem:[%s270 + $0x60] sm:$0xff] %v728
        %745 = vst [vmem:[%s270 + $0x68] sm:$0xff] %v729
        %746 = vst [vmem:[%s270 + $0x70] sm:$0x7f] %v730
        %747 = vst [vmem:[%s270 + $0x78] sm:$0x7f] %v731
        %s748 = scalar_lea.vmem %s244, 128 [#allocation2]
        %v749 = vld [vmem:[%s748] sm:$0xff]
        %v750 = vld [vmem:[%s748 + $0x8] sm:$0xff]
        %v751 = vld [vmem:[%s748 + $0x10] sm:$0xff]
        %v752 = vld [vmem:[%s748 + $0x18] sm:$0xff]
        %v753 = vld [vmem:[%s748 + $0x20] sm:$0xff]
        %v754 = vld [vmem:[%s748 + $0x28] sm:$0xff]
        %v755 = vld [vmem:[%s748 + $0x30] sm:$0xff]
        %v756 = vld [vmem:[%s748 + $0x38] sm:$0xff]
        %v757 = vld [vmem:[%s748 + $0x40] sm:$0xff]
        %v758 = vld [vmem:[%s748 + $0x48] sm:$0xff]
        %v759 = vld [vmem:[%s748 + $0x50] sm:$0xff]
        %v760 = vld [vmem:[%s748 + $0x58] sm:$0xff]
        %v761 = vld [vmem:[%s748 + $0x60] sm:$0xff]
        %v762 = vld [vmem:[%s748 + $0x68] sm:$0xff]
        %v763 = vld [vmem:[%s748 + $0x70] sm:$0x7f]
        %v764 = vld [vmem:[%s748 + $0x78] sm:$0x7f]
        %v766 = vsel %vm400, %v763, 0
        %v769 = vsel %vm400, %v764, 0
        %771 = vmatprep.subr.mxu0 %v750
        %772 = vmatpush1.msra.mxu0 %v749
        %773 = vmatprep.subr.mxu0 %v752
        %774 = vmatpush1.msra.mxu0 %v751
        %775 = vmatprep.subr.mxu0 %v754
        %776 = vmatpush1.msra.mxu0 %v753
        %777 = vmatprep.subr.mxu0 %v756
        %778 = vmatpush1.msra.mxu0 %v755
        %779 = vmatprep.subr.mxu0 %v758
        %780 = vmatpush1.msra.mxu0 %v757
        %781 = vmatprep.subr.mxu0 %v760
        %782 = vmatpush1.msra.mxu0 %v759
        %783 = vmatprep.subr.mxu0 %v762
        %784 = vmatpush1.msra.mxu0 %v761
        %785 = vmatprep.subr.mxu0 %v769
        %786 = vmatpush1.msra.mxu0 %v766
        %787 = vmatprep.subr.mxu0 0.0
        %788 = vmatpush1.msra.mxu0 0.0
        %789 = vmatprep.subr.mxu0 0.0
        %790 = vmatpush1.msra.mxu0 0.0
        %791 = vmatprep.subr.mxu0 0.0
        %792 = vmatpush1.msra.mxu0 0.0
        %793 = vmatprep.subr.mxu0 0.0
        %794 = vmatpush1.msra.mxu0 0.0
        %795 = vmatprep.subr.mxu0 0.0
        %796 = vmatpush1.msra.mxu0 0.0
        %797 = vmatprep.subr.mxu0 0.0
        %798 = vmatpush1.msra.mxu0 0.0
        %799 = vmatprep.subr.mxu0 0.0
        %800 = vmatpush1.msra.mxu0 0.0
        %801 = vmatprep.subr.mxu0 0.0
        %802 = vmatpush1.msra.mxu0 0.0
        %803 = vmatprep.subr.mxu0 0.0
        %804 = vmatpush1.msra.mxu0 0.0
        %805 = vmatprep.subr.mxu0 0.0
        %806 = vmatpush1.msra.mxu0 0.0
        %807 = vmatprep.subr.mxu0 0.0
        %808 = vmatpush1.msra.mxu0 0.0
        %809 = vmatprep.subr.mxu0 0.0
        %810 = vmatpush1.msra.mxu0 0.0
        %811 = vmatprep.subr.mxu0 0.0
        %812 = vmatpush1.msra.mxu0 0.0
        %813 = vmatprep.subr.mxu0 0.0
        %814 = vmatpush1.msra.mxu0 0.0
        %815 = vmatprep.subr.mxu0 0.0
        %816 = vmatpush1.msra.mxu0 0.0
        %817 = vmatprep.subr.mxu0 0.0
        %818 = vmatpush1.msra.mxu0 0.0
        %819 = vmatprep.subr.mxu0 0.0
        %820 = vmatpush1.msra.mxu0 0.0
        %821 = vmatprep.subr.mxu0 0.0
        %822 = vmatpush1.msra.mxu0 0.0
        %823 = vmatprep.subr.mxu0 0.0
        %824 = vmatpush1.msra.mxu0 0.0
        %825 = vmatprep.subr.mxu0 0.0
        %826 = vmatpush1.msra.mxu0 0.0
        %827 = vmatprep.subr.mxu0 0.0
        %828 = vmatpush1.msra.mxu0 0.0
        %829 = vmatprep.subr.mxu0 0.0
        %830 = vmatpush1.msra.mxu0 0.0
        %831 = vmatprep.subr.mxu0 0.0
        %832 = vmatpush1.msra.mxu0 0.0
        %833 = vmatprep.subr.mxu0 0.0
        %834 = vmatpush1.msra.mxu0 0.0
        %835 = vmatprep.mubr.f32.mxu0 0.0
        %836 = vmatmul.mubr.f32.gmra.mrb[0].mxu0 %v377
        %v837 = vpop.f32.mrb[0].mxu0
        %v838 = vadd.f32 %v338, %v837
        %v839 = vpop.f32.mrb[0].mxu0
        %v840 = vadd.f32 %v338, %v839
        %841 = vmatprep.mubr.f32.mxu0 0.0
        %842 = vmatmul.mubr.f32.gmra.mrb[0].mxu0 %v380
        %v843 = vpop.f32.mrb[0].mxu0
        %v844 = vadd.f32 %v343, %v843
        %v845 = vpop.f32.mrb[0].mxu0
        %v846 = vadd.f32 %v343, %v845
        %847 = vmatprep.mubr.f32.mxu0 0.0
        %848 = vmatmul.mubr.f32.gmra.mrb[0].mxu0 %v383
        %v849 = vpop.f32.mrb[0].mxu0
        %v850 = vadd.f32 %v348, %v849
        %v851 = vpop.f32.mrb[0].mxu0
        %v852 = vadd.f32 %v348, %v851
        %853 = vmatprep.mubr.f32.mxu0 0.0
        %854 = vmatmul.mubr.f32.gmra.mrb[0].mxu0 %v386
        %v855 = vpop.f32.mrb[0].mxu0
        %v856 = vadd.f32 %v353, %v855
        %v857 = vpop.f32.mrb[0].mxu0
        %v858 = vadd.f32 %v353, %v857
        %859 = vmatprep.mubr.f32.mxu0 0.0
        %860 = vmatmul.mubr.f32.gmra.mrb[0].mxu0 %v389
        %v861 = vpop.f32.mrb[0].mxu0
        %v862 = vadd.f32 %v358, %v861
        %v863 = vpop.f32.mrb[0].mxu0
        %v864 = vadd.f32 %v358, %v863
        %865 = vmatprep.mubr.f32.mxu0 0.0
        %866 = vmatmul.mubr.f32.gmra.mrb[0].mxu0 %v392
        %v867 = vpop.f32.mrb[0].mxu0
        %v868 = vadd.f32 %v363, %v867
        %v869 = vpop.f32.mrb[0].mxu0
        %v870 = vadd.f32 %v363, %v869
        %871 = vmatprep.mubr.f32.mxu0 0.0
        %872 = vmatmul.mubr.f32.gmra.mrb[0].mxu0 %v395
        %v873 = vpop.f32.mrb[0].mxu0
        %v874 = vadd.f32 %v368, %v873
        %v875 = vpop.f32.mrb[0].mxu0
        %v876 = vadd.f32 %v368, %v875
        %877 = vmatprep.mubr.f32.mxu0 0.0
        %878 = vmatmul.mubr.f32.gmra.mrb[0].mxu0 %v398
        %v879 = vpop.f32.mrb[0].mxu0
        %v880 = vadd.f32 %v373, %v879
        %v881 = vpop.f32.mrb[0].mxu0
        %v882 = vadd.f32 %v373, %v881
        %883 = vdwg.mxu0
        %v884 = vmul.f32 %v838, %v838
        %v885 = vmul.f32 %v840, %v840
        %v886 = vmul.f32 %v844, %v844
        %v887 = vmul.f32 %v846, %v846
        %v888 = vmul.f32 %v850, %v850
        %v889 = vmul.f32 %v852, %v852
        %v890 = vmul.f32 %v856, %v856
        %v891 = vmul.f32 %v858, %v858
        %v892 = vmul.f32 %v862, %v862
        %v893 = vmul.f32 %v864, %v864
        %v894 = vmul.f32 %v868, %v868
        %v895 = vmul.f32 %v870, %v870
        %v896 = vmul.f32 %v874, %v874
        %v897 = vmul.f32 %v876, %v876
        %v898 = vmul.f32 %v880, %v880
        %v899 = vmul.f32 %v882, %v882
        %v900 = vadd.f32 %v884, %v886
        %v901 = vadd.f32 %v900, %v888
        %v902 = vadd.f32 %v901, %v890
        %v903 = vadd.f32 %v902, %v892
        %v904 = vadd.f32 %v903, %v894
        %v905 = vadd.f32 %v904, %v896
        %v906 = vadd.f32 %v905, %v898
        %v907 = vrot.slane %v906, 4
        %v908 = vadd.f32 %v906, %v907
        %v909 = vrot.slane %v908, 2
        %v910 = vadd.f32 %v908, %v909
        %v911 = vrot.slane %v910, 1
        %v912 = vadd.f32 %v910, %v911
        %v913 = vadd.f32 %v885, %v887
        %v914 = vadd.f32 %v913, %v889
        %v915 = vadd.f32 %v914, %v891
        %v916 = vadd.f32 %v915, %v893
        %v917 = vadd.f32 %v916, %v895
        %v918 = vadd.f32 %v917, %v897
        %v919 = vadd.f32 %v918, %v899
        %v920 = vrot.slane %v919, 4
        %v921 = vadd.f32 %v919, %v920
        %v922 = vrot.slane %v921, 2
        %v923 = vadd.f32 %v921, %v922
        %v924 = vrot.slane %v923, 1
        %v925 = vadd.f32 %v923, %v924
        %v926 = vsub.f32 %v912, %v898
        %v927 = vsub.f32 %v925, %v899
        %v928 = vmul.f32 %v926, 0.015873017
        %v929 = vmul.f32 %v927, 0.015873017
        %v930 = vsub.f32 %v928, %v898
        %v931 = vsub.f32 %v929, %v899
        %v932 = vlaneseq
        %v933 = vshrl.u32 %v932, 7
        %v934 = vsub.s32 7, %v933
        %v935 = vrot.slane %v880, %v934
        %v936 = vlaneseq
        %v937 = vshrl.u32 %v936, 7
        %v938 = vsub.s32 7, %v937
        %v939 = vrot.slane %v882, %v938
        %v940 = vsub.f32 %v838, %v935
        %v941 = vsub.f32 %v840, %v939
        %v942 = vsub.f32 %v844, %v935
        %v943 = vsub.f32 %v846, %v939
        %v944 = vsub.f32 %v850, %v935
        %v945 = vsub.f32 %v852, %v939
        %v946 = vsub.f32 %v856, %v935
        %v947 = vsub.f32 %v858, %v939
        %v948 = vsub.f32 %v862, %v935
        %v949 = vsub.f32 %v864, %v939
        %v950 = vsub.f32 %v868, %v935
        %v951 = vsub.f32 %v870, %v939
        %v952 = vsub.f32 %v874, %v935
        %v953 = vsub.f32 %v876, %v939
        %v954 = vsub.f32 %v880, %v935
        %v955 = vsub.f32 %v882, %v939
        %v956 = vadd.f32 %v930, 1e-05
        %v957 = vadd.f32 %v931, 1e-05
        %v958 = vrsqrt.pop %v956
        %v959 = vrsqrt.pop %v957
        %v960 = vlaneseq
        %v961 = vshrl.u32 %v960, 7
        %v962 = vsub.s32 7, %v961
        %v963 = vrot.slane %v958, %v962
        %v964 = vlaneseq
        %v965 = vshrl.u32 %v964, 7
        %v966 = vsub.s32 7, %v965
        %v967 = vrot.slane %v959, %v966
        %v968 = vmul.f32 %v940, %v963
        %v969 = vmul.f32 %v941, %v967
        %v970 = vmul.f32 %v942, %v963
        %v971 = vmul.f32 %v943, %v967
        %v972 = vmul.f32 %v944, %v963
        %v973 = vmul.f32 %v945, %v967
        %v974 = vmul.f32 %v946, %v963
        %v975 = vmul.f32 %v947, %v967
        %v976 = vmul.f32 %v948, %v963
        %v977 = vmul.f32 %v949, %v967
        %v978 = vmul.f32 %v950, %v963
        %v979 = vmul.f32 %v951, %v967
        %v980 = vmul.f32 %v952, %v963
        %v981 = vmul.f32 %v953, %v967
        %v982 = vmul.f32 %v954, %v963
        %v983 = vmul.f32 %v955, %v967
        %v984 = vmul.f32 %v968, %v623
        %v985 = vmul.f32 %v969, %v623
        %v986 = vmul.f32 %v970, %v628
        %v987 = vmul.f32 %v971, %v628
        %v988 = vmul.f32 %v972, %v633
        %v989 = vmul.f32 %v973, %v633
        %v990 = vmul.f32 %v974, %v638
        %v991 = vmul.f32 %v975, %v638
        %v992 = vmul.f32 %v976, %v643
        %v993 = vmul.f32 %v977, %v643
        %v994 = vmul.f32 %v978, %v648
        %v995 = vmul.f32 %v979, %v648
        %v996 = vmul.f32 %v980, %v653
        %v997 = vmul.f32 %v981, %v653
        %v998 = vmul.f32 %v982, %v658
        %v999 = vmul.f32 %v983, %v658
        %v1000 = vadd.f32 %v984, %v679
        %v1001 = vadd.f32 %v985, %v679
        %v1002 = vadd.f32 %v986, %v684
        %v1003 = vadd.f32 %v987, %v684
        %v1004 = vadd.f32 %v988, %v689
        %v1005 = vadd.f32 %v989, %v689
        %v1006 = vadd.f32 %v990, %v694
        %v1007 = vadd.f32 %v991, %v694
        %v1008 = vadd.f32 %v992, %v699
        %v1009 = vadd.f32 %v993, %v699
        %v1010 = vadd.f32 %v994, %v704
        %v1011 = vadd.f32 %v995, %v704
        %v1012 = vadd.f32 %v996, %v709
        %v1013 = vadd.f32 %v997, %v709
        %v1014 = vadd.f32 %v998, %v714
        %v1015 = vadd.f32 %v999, %v714
        %s1016 = scalar_lea.vmem %s270, 128 [#allocation5]
        %1017 = vst [vmem:[%s1016] sm:$0xff] %v1000
        %1018 = vst [vmem:[%s1016 + $0x8] sm:$0xff] %v1001
        %1019 = vst [vmem:[%s1016 + $0x10] sm:$0xff] %v1002
        %1020 = vst [vmem:[%s1016 + $0x18] sm:$0xff] %v1003
        %1021 = vst [vmem:[%s1016 + $0x20] sm:$0xff] %v1004
        %1022 = vst [vmem:[%s1016 + $0x28] sm:$0xff] %v1005
        %1023 = vst [vmem:[%s1016 + $0x30] sm:$0xff] %v1006
        %1024 = vst [vmem:[%s1016 + $0x38] sm:$0xff] %v1007
        %1025 = vst [vmem:[%s1016 + $0x40] sm:$0xff] %v1008
        %1026 = vst [vmem:[%s1016 + $0x48] sm:$0xff] %v1009
        %1027 = vst [vmem:[%s1016 + $0x50] sm:$0xff] %v1010
        %1028 = vst [vmem:[%s1016 + $0x58] sm:$0xff] %v1011
        %1029 = vst [vmem:[%s1016 + $0x60] sm:$0xff] %v1012
        %1030 = vst [vmem:[%s1016 + $0x68] sm:$0xff] %v1013
        %1031 = vst [vmem:[%s1016 + $0x70] sm:$0x7f] %v1014
        %1032 = vst [vmem:[%s1016 + $0x78] sm:$0x7f] %v1015
        %s1033 = scalar_lea.vmem %s244, 256 [#allocation2]
        %v1034 = vld [vmem:[%s1033] sm:$0xff]
        %v1035 = vld [vmem:[%s1033 + $0x8] sm:$0xff]
        %v1036 = vld [vmem:[%s1033 + $0x10] sm:$0xff]
        %v1037 = vld [vmem:[%s1033 + $0x18] sm:$0xff]
        %v1038 = vld [vmem:[%s1033 + $0x20] sm:$0xff]
        %v1039 = vld [vmem:[%s1033 + $0x28] sm:$0xff]
        %v1040 = vld [vmem:[%s1033 + $0x30] sm:$0xff]
        %v1041 = vld [vmem:[%s1033 + $0x38] sm:$0xff]
        %v1042 = vld [vmem:[%s1033 + $0x40] sm:$0xff]
        %v1043 = vld [vmem:[%s1033 + $0x48] sm:$0xff]
        %v1044 = vld [vmem:[%s1033 + $0x50] sm:$0xff]
        %v1045 = vld [vmem:[%s1033 + $0x58] sm:$0xff]
        %v1046 = vld [vmem:[%s1033 + $0x60] sm:$0xff]
        %v1047 = vld [vmem:[%s1033 + $0x68] sm:$0xff]
        %v1048 = vld [vmem:[%s1033 + $0x70] sm:$0x7f]
        %v1049 = vld [vmem:[%s1033 + $0x78] sm:$0x7f]
        %v1051 = vsel %vm400, %v1048, 0
        %v1054 = vsel %vm400, %v1049, 0
        %1056 = vmatprep.subr.mxu0 %v1035
        %1057 = vmatpush1.msra.mxu0 %v1034
        %1058 = vmatprep.subr.mxu0 %v1037
        %1059 = vmatpush1.msra.mxu0 %v1036
        %1060 = vmatprep.subr.mxu0 %v1039
        %1061 = vmatpush1.msra.mxu0 %v1038
        %1062 = vmatprep.subr.mxu0 %v1041
        %1063 = vmatpush1.msra.mxu0 %v1040
        %1064 = vmatprep.subr.mxu0 %v1043
        %1065 = vmatpush1.msra.mxu0 %v1042
        %1066 = vmatprep.subr.mxu0 %v1045
        %1067 = vmatpush1.msra.mxu0 %v1044
        %1068 = vmatprep.subr.mxu0 %v1047
        %1069 = vmatpush1.msra.mxu0 %v1046
        %1070 = vmatprep.subr.mxu0 %v1054
        %1071 = vmatpush1.msra.mxu0 %v1051
        %1072 = vmatprep.subr.mxu0 0.0
        %1073 = vmatpush1.msra.mxu0 0.0
        %1074 = vmatprep.subr.mxu0 0.0
        %1075 = vmatpush1.msra.mxu0 0.0
        %1076 = vmatprep.subr.mxu0 0.0
        %1077 = vmatpush1.msra.mxu0 0.0
        %1078 = vmatprep.subr.mxu0 0.0
        %1079 = vmatpush1.msra.mxu0 0.0
        %1080 = vmatprep.subr.mxu0 0.0
        %1081 = vmatpush1.msra.mxu0 0.0
        %1082 = vmatprep.subr.mxu0 0.0
        %1083 = vmatpush1.msra.mxu0 0.0
        %1084 = vmatprep.subr.mxu0 0.0
        %1085 = vmatpush1.msra.mxu0 0.0
        %1086 = vmatprep.subr.mxu0 0.0
        %1087 = vmatpush1.msra.mxu0 0.0
        %1088 = vmatprep.subr.mxu0 0.0
        %1089 = vmatpush1.msra.mxu0 0.0
        %1090 = vmatprep.subr.mxu0 0.0
        %1091 = vmatpush1.msra.mxu0 0.0
        %1092 = vmatprep.subr.mxu0 0.0
        %1093 = vmatpush1.msra.mxu0 0.0
        %1094 = vmatprep.subr.mxu0 0.0
        %1095 = vmatpush1.msra.mxu0 0.0
        %1096 = vmatprep.subr.mxu0 0.0
        %1097 = vmatpush1.msra.mxu0 0.0
        %1098 = vmatprep.subr.mxu0 0.0
        %1099 = vmatpush1.msra.mxu0 0.0
        %1100 = vmatprep.subr.mxu0 0.0
        %1101 = vmatpush1.msra.mxu0 0.0
        %1102 = vmatprep.subr.mxu0 0.0
        %1103 = vmatpush1.msra.mxu0 0.0
        %1104 = vmatprep.subr.mxu0 0.0
        %1105 = vmatpush1.msra.mxu0 0.0
        %1106 = vmatprep.subr.mxu0 0.0
        %1107 = vmatpush1.msra.mxu0 0.0
        %1108 = vmatprep.subr.mxu0 0.0
        %1109 = vmatpush1.msra.mxu0 0.0
        %1110 = vmatprep.subr.mxu0 0.0
        %1111 = vmatpush1.msra.mxu0 0.0
        %1112 = vmatprep.subr.mxu0 0.0
        %1113 = vmatpush1.msra.mxu0 0.0
        %1114 = vmatprep.subr.mxu0 0.0
        %1115 = vmatpush1.msra.mxu0 0.0
        %1116 = vmatprep.subr.mxu0 0.0
        %1117 = vmatpush1.msra.mxu0 0.0
        %1118 = vmatprep.subr.mxu0 0.0
        %1119 = vmatpush1.msra.mxu0 0.0
        %1120 = vmatprep.mubr.f32.mxu0 0.0
        %1121 = vmatmul.mubr.f32.gmra.mrb[0].mxu0 %v377
        %v1122 = vpop.f32.mrb[0].mxu0
        %v1123 = vadd.f32 %v338, %v1122
        %v1124 = vpop.f32.mrb[0].mxu0
        %v1125 = vadd.f32 %v338, %v1124
        %1126 = vmatprep.mubr.f32.mxu0 0.0
        %1127 = vmatmul.mubr.f32.gmra.mrb[0].mxu0 %v380
        %v1128 = vpop.f32.mrb[0].mxu0
        %v1129 = vadd.f32 %v343, %v1128
        %v1130 = vpop.f32.mrb[0].mxu0
        %v1131 = vadd.f32 %v343, %v1130
        %1132 = vmatprep.mubr.f32.mxu0 0.0
        %1133 = vmatmul.mubr.f32.gmra.mrb[0].mxu0 %v383
        %v1134 = vpop.f32.mrb[0].mxu0
        %v1135 = vadd.f32 %v348, %v1134
        %v1136 = vpop.f32.mrb[0].mxu0
        %v1137 = vadd.f32 %v348, %v1136
        %1138 = vmatprep.mubr.f32.mxu0 0.0
        %1139 = vmatmul.mubr.f32.gmra.mrb[0].mxu0 %v386
        %v1140 = vpop.f32.mrb[0].mxu0
        %v1141 = vadd.f32 %v353, %v1140
        %v1142 = vpop.f32.mrb[0].mxu0
        %v1143 = vadd.f32 %v353, %v1142
        %1144 = vmatprep.mubr.f32.mxu0 0.0
        %1145 = vmatmul.mubr.f32.gmra.mrb[0].mxu0 %v389
        %v1146 = vpop.f32.mrb[0].mxu0
        %v1147 = vadd.f32 %v358, %v1146
        %v1148 = vpop.f32.mrb[0].mxu0
        %v1149 = vadd.f32 %v358, %v1148
        %1150 = vmatprep.mubr.f32.mxu0 0.0
        %1151 = vmatmul.mubr.f32.gmra.mrb[0].mxu0 %v392
        %v1152 = vpop.f32.mrb[0].mxu0
        %v1153 = vadd.f32 %v363, %v1152
        %v1154 = vpop.f32.mrb[0].mxu0
        %v1155 = vadd.f32 %v363, %v1154
        %1156 = vmatprep.mubr.f32.mxu0 0.0
        %1157 = vmatmul.mubr.f32.gmra.mrb[0].mxu0 %v395
        %v1158 = vpop.f32.mrb[0].mxu0
        %v1159 = vadd.f32 %v368, %v1158
        %v1160 = vpop.f32.mrb[0].mxu0
        %v1161 = vadd.f32 %v368, %v1160
        %1162 = vmatprep.mubr.f32.mxu0 0.0
        %1163 = vmatmul.mubr.f32.gmra.mrb[0].mxu0 %v398
        %v1164 = vpop.f32.mrb[0].mxu0
        %v1165 = vadd.f32 %v373, %v1164
        %v1166 = vpop.f32.mrb[0].mxu0
        %v1167 = vadd.f32 %v373, %v1166
        %1168 = vdwg.mxu0
        %v1169 = vmul.f32 %v1123, %v1123
        %v1170 = vmul.f32 %v1125, %v1125
        %v1171 = vmul.f32 %v1129, %v1129
        %v1172 = vmul.f32 %v1131, %v1131
        %v1173 = vmul.f32 %v1135, %v1135
        %v1174 = vmul.f32 %v1137, %v1137
        %v1175 = vmul.f32 %v1141, %v1141
        %v1176 = vmul.f32 %v1143, %v1143
        %v1177 = vmul.f32 %v1147, %v1147
        %v1178 = vmul.f32 %v1149, %v1149
        %v1179 = vmul.f32 %v1153, %v1153
        %v1180 = vmul.f32 %v1155, %v1155
        %v1181 = vmul.f32 %v1159, %v1159
        %v1182 = vmul.f32 %v1161, %v1161
        %v1183 = vmul.f32 %v1165, %v1165
        %v1184 = vmul.f32 %v1167, %v1167
        %v1185 = vadd.f32 %v1169, %v1171
        %v1186 = vadd.f32 %v1185, %v1173
        %v1187 = vadd.f32 %v1186, %v1175
        %v1188 = vadd.f32 %v1187, %v1177
        %v1189 = vadd.f32 %v1188, %v1179
        %v1190 = vadd.f32 %v1189, %v1181
        %v1191 = vadd.f32 %v1190, %v1183
        %v1192 = vrot.slane %v1191, 4
        %v1193 = vadd.f32 %v1191, %v1192
        %v1194 = vrot.slane %v1193, 2
        %v1195 = vadd.f32 %v1193, %v1194
        %v1196 = vrot.slane %v1195, 1
        %v1197 = vadd.f32 %v1195, %v1196
        %v1198 = vadd.f32 %v1170, %v1172
        %v1199 = vadd.f32 %v1198, %v1174
        %v1200 = vadd.f32 %v1199, %v1176
        %v1201 = vadd.f32 %v1200, %v1178
        %v1202 = vadd.f32 %v1201, %v1180
        %v1203 = vadd.f32 %v1202, %v1182
        %v1204 = vadd.f32 %v1203, %v1184
        %v1205 = vrot.slane %v1204, 4
        %v1206 = vadd.f32 %v1204, %v1205
        %v1207 = vrot.slane %v1206, 2
        %v1208 = vadd.f32 %v1206, %v1207
        %v1209 = vrot.slane %v1208, 1
        %v1210 = vadd.f32 %v1208, %v1209
        %v1211 = vsub.f32 %v1197, %v1183
        %v1212 = vsub.f32 %v1210, %v1184
        %v1213 = vmul.f32 %v1211, 0.015873017
        %v1214 = vmul.f32 %v1212, 0.015873017
        %v1215 = vsub.f32 %v1213, %v1183
        %v1216 = vsub.f32 %v1214, %v1184
        %v1217 = vlaneseq
        %v1218 = vshrl.u32 %v1217, 7
        %v1219 = vsub.s32 7, %v1218
        %v1220 = vrot.slane %v1165, %v1219
        %v1221 = vlaneseq
        %v1222 = vshrl.u32 %v1221, 7
        %v1223 = vsub.s32 7, %v1222
        %v1224 = vrot.slane %v1167, %v1223
        %v1225 = vsub.f32 %v1123, %v1220
        %v1226 = vsub.f32 %v1125, %v1224
        %v1227 = vsub.f32 %v1129, %v1220
        %v1228 = vsub.f32 %v1131, %v1224
        %v1229 = vsub.f32 %v1135, %v1220
        %v1230 = vsub.f32 %v1137, %v1224
        %v1231 = vsub.f32 %v1141, %v1220
        %v1232 = vsub.f32 %v1143, %v1224
        %v1233 = vsub.f32 %v1147, %v1220
        %v1234 = vsub.f32 %v1149, %v1224
        %v1235 = vsub.f32 %v1153, %v1220
        %v1236 = vsub.f32 %v1155, %v1224
        %v1237 = vsub.f32 %v1159, %v1220
        %v1238 = vsub.f32 %v1161, %v1224
        %v1239 = vsub.f32 %v1165, %v1220
        %v1240 = vsub.f32 %v1167, %v1224
        %v1241 = vadd.f32 %v1215, 1e-05
        %v1242 = vadd.f32 %v1216, 1e-05
        %v1243 = vrsqrt.pop %v1241
        %v1244 = vrsqrt.pop %v1242
        %v1245 = vlaneseq
        %v1246 = vshrl.u32 %v1245, 7
        %v1247 = vsub.s32 7, %v1246
        %v1248 = vrot.slane %v1243, %v1247
        %v1249 = vlaneseq
        %v1250 = vshrl.u32 %v1249, 7
        %v1251 = vsub.s32 7, %v1250
        %v1252 = vrot.slane %v1244, %v1251
        %v1253 = vmul.f32 %v1225, %v1248
        %v1254 = vmul.f32 %v1226, %v1252
        %v1255 = vmul.f32 %v1227, %v1248
        %v1256 = vmul.f32 %v1228, %v1252
        %v1257 = vmul.f32 %v1229, %v1248
        %v1258 = vmul.f32 %v1230, %v1252
        %v1259 = vmul.f32 %v1231, %v1248
        %v1260 = vmul.f32 %v1232, %v1252
        %v1261 = vmul.f32 %v1233, %v1248
        %v1262 = vmul.f32 %v1234, %v1252
        %v1263 = vmul.f32 %v1235, %v1248
        %v1264 = vmul.f32 %v1236, %v1252
        %v1265 = vmul.f32 %v1237, %v1248
        %v1266 = vmul.f32 %v1238, %v1252
        %v1267 = vmul.f32 %v1239, %v1248
        %v1268 = vmul.f32 %v1240, %v1252
        %v1269 = vmul.f32 %v1253, %v623
        %v1270 = vmul.f32 %v1254, %v623
        %v1271 = vmul.f32 %v1255, %v628
        %v1272 = vmul.f32 %v1256, %v628
        %v1273 = vmul.f32 %v1257, %v633
        %v1274 = vmul.f32 %v1258, %v633
        %v1275 = vmul.f32 %v1259, %v638
        %v1276 = vmul.f32 %v1260, %v638
        %v1277 = vmul.f32 %v1261, %v643
        %v1278 = vmul.f32 %v1262, %v643
        %v1279 = vmul.f32 %v1263, %v648
        %v1280 = vmul.f32 %v1264, %v648
        %v1281 = vmul.f32 %v1265, %v653
        %v1282 = vmul.f32 %v1266, %v653
        %v1283 = vmul.f32 %v1267, %v658
        %v1284 = vmul.f32 %v1268, %v658
        %v1285 = vadd.f32 %v1269, %v679
        %v1286 = vadd.f32 %v1270, %v679
        %v1287 = vadd.f32 %v1271, %v684
        %v1288 = vadd.f32 %v1272, %v684
        %v1289 = vadd.f32 %v1273, %v689
        %v1290 = vadd.f32 %v1274, %v689
        %v1291 = vadd.f32 %v1275, %v694
        %v1292 = vadd.f32 %v1276, %v694
        %v1293 = vadd.f32 %v1277, %v699
        %v1294 = vadd.f32 %v1278, %v699
        %v1295 = vadd.f32 %v1279, %v704
        %v1296 = vadd.f32 %v1280, %v704
        %v1297 = vadd.f32 %v1281, %v709
        %v1298 = vadd.f32 %v1282, %v709
        %v1299 = vadd.f32 %v1283, %v714
        %v1300 = vadd.f32 %v1284, %v714
        %s1301 = scalar_lea.vmem %s270, 256 [#allocation5]
        %1302 = vst [vmem:[%s1301] sm:$0xff] %v1285
        %1303 = vst [vmem:[%s1301 + $0x8] sm:$0xff] %v1286
        %1304 = vst [vmem:[%s1301 + $0x10] sm:$0xff] %v1287
        %1305 = vst [vmem:[%s1301 + $0x18] sm:$0xff] %v1288
        %1306 = vst [vmem:[%s1301 + $0x20] sm:$0xff] %v1289
        %1307 = vst [vmem:[%s1301 + $0x28] sm:$0xff] %v1290
        %1308 = vst [vmem:[%s1301 + $0x30] sm:$0xff] %v1291
        %1309 = vst [vmem:[%s1301 + $0x38] sm:$0xff] %v1292
        %1310 = vst [vmem:[%s1301 + $0x40] sm:$0xff] %v1293
        %1311 = vst [vmem:[%s1301 + $0x48] sm:$0xff] %v1294
        %1312 = vst [vmem:[%s1301 + $0x50] sm:$0xff] %v1295
        %1313 = vst [vmem:[%s1301 + $0x58] sm:$0xff] %v1296
        %1314 = vst [vmem:[%s1301 + $0x60] sm:$0xff] %v1297
        %1315 = vst [vmem:[%s1301 + $0x68] sm:$0xff] %v1298
        %1316 = vst [vmem:[%s1301 + $0x70] sm:$0x7f] %v1299
        %1317 = vst [vmem:[%s1301 + $0x78] sm:$0x7f] %v1300
        %s1318 = sand.u32 %s156, 1
        %s1319 = scalar_lea.sflag [#allocation4], %s1318
        %s1320 = sand.u32 %s156, 1
        %s1321 = smul.addr %s1320, 384
        %s1322 = scalar_lea.vmem [#allocation5], %s1321
        // Predicated region
        $region45: #{tpu_custom_call.1} parent=39 // pred_check
          %p1323 = pneg %p166
        $region46: #{tpu_custom_call.1} parent=39 // pred_check_branch
          %1325 = sbr.rel (%p1323) target = $region48
        $region47: #{tpu_custom_call.1} parent=39 // pred_region
          %s1326 = smul.u32 3, %s26
          %s1327 = smul.u32 2, %s27
          %s1328 = ssub.s32 10, %s1326
          %p1329 = scmp.lt.s32.totalorder %s1328, 3
          %s1330 = scalar_select %p1329, %s1328, 3
          %s1331 = smul.u32 128, %s1330
          %s1332 = smul.u32 %s1331, 8
          %s1333 = smul.u32 %s1332, 2
          %s1335 = ssub.s32 6144, %s1333
          %1336 = vsyncadd %s1319, %s1335
          %p1337 = scmp.ne.s32.totalorder 0, %s1333
          %s1338 = smul.addr %s1326, 16
          %s1339 = sadd.s32 %s1327, %s1338
          %s1340 = smul.addr %s1339, 128
          %s1341 = scalar_lea.hbm %s5, %s1340
          %s1342 = smul.u32 %s1330, 8
          %s1343 = smul.u32 16, %s1342
          %s1344 = sshll.u32 %s1322, 4
          %s1345 = int_to_ptr.vmem [resolvable:$true] %s1344
          %s1346 = sshll.u32 %s1343, 4
          %1350 = dma.vmem_to_hbm [thread:$0]  (%p1337), %s1345, %s1346, %s1341, %s1319, 256, 256, 16
        $region48: #{tpu_custom_call.1} parent=39 // pred_fallthru
          _
      $region40: #{tpu_custom_call.1} parent=5 // pred_fallthru
        _
      %p1351 = scmp.le.s32.totalorder 2, %s17
      // Predicated region
      $region49: #{tpu_custom_call.1} parent=5 // pred_check
        %p1352 = pneg %p1351
      $region50: #{tpu_custom_call.1} parent=5 // pred_check_branch
        %1354 = sbr.rel (%p1352) target = $region52
      $region51: #{tpu_custom_call.1} parent=5 // pred_region
        %s1355 = ssub.s32 %s17, 2
        // Predicated region
        $region53: #{tpu_custom_call.1} parent=51 // pred_check
          %p1356 = pneg %p172
        $region54: #{tpu_custom_call.1} parent=51 // pred_check_branch
          %1358 = sbr.rel (%p1356) target = $region56
        $region55: #{tpu_custom_call.1} parent=51 // pred_region
          %s1359 = sand.u32 %s157, 1
          %s1360 = scalar_lea.sflag [#allocation4], %s1359
          %s1361 = sand.u32 %s157, 1
          %s1362 = smul.addr %s1361, 384
          %s1363 = scalar_lea.vmem [#allocation5], %s1362
          %1364 = dma.done %s1360, 6144
        $region56: #{tpu_custom_call.1} parent=51 // pred_fallthru
          _
      $region52: #{tpu_custom_call.1} parent=5 // pred_fallthru
        _
    $region6: #{tpu_custom_call.1} parent=1 // loop_footer
      %s21 = sadd.s32 1, %s17
    $region7: #{tpu_custom_call.1} parent=1 // loop_footer_branch
      %16 = sbr.rel target = $region3
    $region8: #{tpu_custom_call.1} parent=1 // loop_exit
      _
    %1365 = vsyncpa [#allocation3], 1
    %s1366 = scalar_lea.sflag [#allocation3], 1
    %1367 = vsyncpa %s1366, 1
    %1368 = vsyncpa [#allocation4], 1
    %s1369 = scalar_lea.sflag [#allocation4], 1
    %1370 = vsyncpa %s1369, 1

</llo_original>
